<compile_context>
chip_gen: v6e
topology: v6e:2x2x1
jax: 0.10.0
libtpu: 0.0.40
codegen_flags: <defaults>
</compile_context>

<pallas_src>
import jax
import jax.numpy as jnp
from jax.experimental import pallas as pl
from jax.experimental.pallas import tpu as pltpu


def cvae_kernel(
    # batch-tiled inputs (x, c in bf16; eps in f32)
    x_ref, c_ref, eps_ref,
    # encoder weights (bf16) / biases (f32); layer 1 split into x/c parts,
    # head merged into a single (H, 2Z) weight
    we1x, we1c, be1, we2, be2, we3, be3, we4, be4,
    # decoder weights; first layer split into z-part and c-part (== concat)
    wd1z, wd1c, bd1, wd2, bd2, wd3, bd3, wd4, bd4,
    # outputs (f32): padded x_hat and packed [mu | logvar]
    xhat_ref, mulv_ref,
):
    f32 = jnp.float32
    bf16 = jnp.bfloat16
    Z = eps_ref.shape[-1]

    def mm(a, w):
        # bf16 x bf16 MXU matmul with f32 accumulation.
        return jnp.dot(a.astype(bf16), w[...], preferred_element_type=f32)

    # ----- encoder: concat(x, c) handled via split first-layer weights -------
    h = jnp.maximum(mm(x_ref[...], we1x) + mm(c_ref[...], we1c) + be1[...], 0.0)
    h = jnp.maximum(mm(h, we2) + be2[...], 0.0)
    h = jnp.maximum(mm(h, we3) + be3[...], 0.0)

    # ----- encoder head: single (H, 2Z) matmul, one packed store -------------
    mulv = mm(h, we4) + be4[...]
    mulv_ref[...] = mulv
    mu = mulv[:, :Z]          # in-vreg lane slices (2Z <= 128 lanes)
    logvar = mulv[:, Z:]

    # ----- reparametrize (f32 on VPU/EUP): z = mu + eps * exp(0.5*logvar) ----
    # TODO(synk): eps (torch.randn_like) is sampled host-side and passed in;
    # an in-kernel pltpu.prng_random_bits draw would be the alternative.
    z = mu + eps_ref[...] * jnp.exp(0.5 * logvar)

    # ----- decoder: concat(z, c) handled via split first-layer weights -------
    d = jnp.maximum(mm(z, wd1z) + mm(c_ref[...], wd1c) + bd1[...], 0.0)
    d = jnp.maximum(mm(d, wd2) + bd2[...], 0.0)
    d = jnp.maximum(mm(d, wd3) + bd3[...], 0.0)
    logits = mm(d, wd4) + bd4[...]
    # sigmoid(x) = 1 / (1 + exp(-x)); reciprocal on the EUP slot.
    xhat_ref[...] = pl.reciprocal(1.0 + jnp.exp(-logits), approx=True)


_WEIGHT_ORDER = (
    "we1x", "we1c", "be1", "we2", "be2", "we3", "be3", "we4", "be4",
    "wd1z", "wd1c", "bd1", "wd2", "bd2", "wd3", "bd3", "wd4", "bd4",
)


def _default_batch_tile(n):
    """Largest tile dividing n that still gives >=4 grid steps (DMA/compute
    overlap + megacore sharding on v7x), preferring >=256 rows/step for MXU
    fill on v6e/v7x.  Falls back to a whole-batch tile for tiny n."""
    for bn in (1024, 512, 256, 128, 64, 32, 16, 8):
        if n % bn == 0 and n // bn >= 4:
            return bn
    return n


def cvae_forward(x, c, eps, params, *, batch_tile=None, vmem_limit_bytes=None):
    """x: (N, D) f32, c: (N, C) f32 one-hot, eps: (N, Z) f32.

    Returns (x_hat, mu, logvar), all f32.

    batch_tile=None -> auto: >=4 grid steps so input DMA / x_hat writeback is
    pipelined against compute (this kernel is HBM-bound at production dims).
    At production D=784 keep batch_tile <= ~2048 on v7x (64 MiB VMEM) and set
    vmem_limit_bytes when batch_tile >= ~1024 on v5e (16 MiB default scoped).
    Weights use a constant index_map so they stay VMEM-resident (one-time DMA)
    across the whole grid.
    """
    N, D = x.shape
    C = c.shape[1]
    Z = eps.shape[1]
    bn = _default_batch_tile(N) if batch_tile is None else batch_tile
    assert N % bn == 0

    # Lane-dense x_hat stores: zero-pad the output feature dim to a multiple of
    # 128 (e.g. production 784 -> 896); sliced back below.  No-op if aligned.
    D_pad = ((D + 127) // 128) * 128
    wd4, bd4 = params["wd4"], params["bd4"]
    if D_pad != D:
        wd4 = jnp.pad(wd4, ((0, 0), (0, D_pad - D)))
        bd4 = jnp.pad(bd4, ((0, 0), (0, D_pad - D)))

    # bf16 inputs halve the streamed input DMA bytes (f32 MXU accumulation).
    x_bf = x.astype(jnp.bfloat16)
    c_bf = c.astype(jnp.bfloat16)

    batched = lambda f: pl.BlockSpec((bn, f), lambda i: (i, 0))
    resident = lambda a: pl.BlockSpec(a.shape, lambda i: (0, 0))

    weight_args = [params[k] for k in _WEIGHT_ORDER[:-2]] + [wd4, bd4]
    weight_specs = [resident(a) for a in weight_args]

    out_shapes = (
        jax.ShapeDtypeStruct((N, D_pad), jnp.float32),   # x_hat (padded)
        jax.ShapeDtypeStruct((N, 2 * Z), jnp.float32),   # [mu | logvar]
    )

    x_hat_pad, mulv = pl.pallas_call(
        cvae_kernel,
        out_shape=out_shapes,
        grid_spec=pltpu.PrefetchScalarGridSpec(
            num_scalar_prefetch=0,
            grid=(N // bn,),
            in_specs=[batched(D), batched(C), batched(Z)] + weight_specs,
            out_specs=[batched(D_pad), batched(2 * Z)],
        ),
        compiler_params=pltpu.CompilerParams(
            dimension_semantics=("parallel",),
            vmem_limit_bytes=vmem_limit_bytes),
    )(x_bf, c_bf, eps, *weight_args)

    x_hat = x_hat_pad[:, :D] if D_pad != D else x_hat_pad
    mu, logvar = mulv[:, :Z], mulv[:, Z:]
    return x_hat, mu, logvar


def init_params(key, input_size, hidden_dim, latent_size, num_classes):
    """Deterministic synthetic weights.  Linear weights stored as (in, out),
    cast to bf16; biases kept f32 as (1, out).
    NOTE: keep the we4 (logvar) path in f32 if strict parity with an f32
    PyTorch model is required (exp(0.5*logvar) amplifies quantization)."""
    def linear_init(k, fan_in, fan_out):
        kw, kb = jax.random.split(k)
        bound = 1.0 / jnp.sqrt(fan_in)
        w = jax.random.uniform(kw, (fan_in, fan_out), jnp.float32, -bound, bound)
        b = jax.random.uniform(kb, (1, fan_out), jnp.float32, -bound, bound)
        return w.astype(jnp.bfloat16), b

    keys = jax.random.split(key, 8)
    p = {}
    # encoder; first layer split into x-part / c-part (== one (D+C, H) linear
    # applied to concat(x, c)).
    we1, p["be1"] = linear_init(keys[0], input_size + num_classes, hidden_dim)
    p["we1x"], p["we1c"] = we1[:input_size], we1[input_size:]
    p["we2"], p["be2"] = linear_init(keys[1], hidden_dim, hidden_dim)
    p["we3"], p["be3"] = linear_init(keys[2], hidden_dim, hidden_dim)
    # encoder head kept as a single (H, 2Z) linear (mu | logvar columns).
    p["we4"], p["be4"] = linear_init(keys[3], hidden_dim, 2 * latent_size)
    # decoder; first layer split into z-part / c-part (== one (Z+C, H) linear
    # applied to concat(z, c)).
    wd1, p["bd1"] = linear_init(keys[4], latent_size + num_classes, hidden_dim)
    p["wd1z"], p["wd1c"] = wd1[:latent_size], wd1[latent_size:]
    p["wd2"], p["bd2"] = linear_init(keys[5], hidden_dim, hidden_dim)
    p["wd3"], p["bd3"] = linear_init(keys[6], hidden_dim, hidden_dim)
    p["wd4"], p["bd4"] = linear_init(keys[7], hidden_dim, input_size)
    return p


def cvae_reference(x, c, eps, p):
    """Pure-JAX reference matching the PyTorch forward semantics, using the
    same precision recipe as the kernel (bf16 matmul inputs, f32 accumulate)."""
    bf16, f32 = jnp.bfloat16, jnp.float32
    Z = eps.shape[1]

    def mm(a, w):
        return jnp.dot(a.astype(bf16), w, preferred_element_type=f32)

    h = jax.nn.relu(mm(x, p["we1x"]) + mm(c, p["we1c"]) + p["be1"])
    h = jax.nn.relu(mm(h, p["we2"]) + p["be2"])
    h = jax.nn.relu(mm(h, p["we3"]) + p["be3"])
    mulv = mm(h, p["we4"]) + p["be4"]
    mu, logvar = mulv[:, :Z], mulv[:, Z:]
    z = mu + eps * jnp.exp(0.5 * logvar)
    d = jax.nn.relu(mm(z, p["wd1z"]) + mm(c, p["wd1c"]) + p["bd1"])
    d = jax.nn.relu(mm(d, p["wd2"]) + p["bd2"])
    d = jax.nn.relu(mm(d, p["wd3"]) + p["bd3"])
    x_hat = jax.nn.sigmoid(mm(d, p["wd4"]) + p["bd4"])
    return x_hat, mu, logvar


if __name__ == "__main__":
    # Small, lane-friendly stand-ins for the MNIST FC-CVAE dims
    # (784/256/15/10).  N=256 -> 4 grid steps of 64 rows: exercises the
    # batch-tiled pipeline (the production path), not the degenerate grid=(1,).
    N, D, H, Z, C = 256, 128, 128, 16, 16

    key = jax.random.PRNGKey(0)
    k_x, k_c, k_eps, k_p = jax.random.split(key, 4)

    x = jax.random.uniform(k_x, (N, D), jnp.float32)
    labels = jax.random.randint(k_c, (N,), 0, C)
    c = jax.nn.one_hot(labels, C, dtype=jnp.float32)
    # Reparametrization noise (torch.randn_like equivalent), sampled here so
    # the run is deterministic; mu + eps * std happens inside the kernel.
    eps = jax.random.normal(k_eps, (N, Z), jnp.float32)

    params = init_params(k_p, D, H, Z, C)

    x_hat, mu, logvar = cvae_forward(x, c, eps, params)
    jax.block_until_ready((x_hat, mu, logvar))

    # Sanity-check against the pure-JAX reference (same bf16 weight recipe).
    x_hat_r, mu_r, logvar_r = cvae_reference(x, c, eps, params)
    assert jnp.allclose(x_hat, x_hat_r, atol=1e-2, rtol=1e-2), "x_hat mismatch"
    assert jnp.allclose(mu, mu_r, atol=1e-2, rtol=1e-2), "mu mismatch"
    assert jnp.allclose(logvar, logvar_r, atol=1e-2, rtol=1e-2), "logvar mismatch"

    print("KERNEL_OK")
</pallas_src>

<mosaic_0001>
module attributes {stable_mosaic.version = 11 : i64} {
  func.func @cvae_kernel(%arg0: i32, %arg1: memref<64x128xbf16, #tpu.memory_space<vmem>>, %arg2: memref<64x16xbf16, #tpu.memory_space<vmem>>, %arg3: memref<64x16xf32, #tpu.memory_space<vmem>>, %arg4: memref<128x128xbf16, #tpu.memory_space<vmem>>, %arg5: memref<16x128xbf16, #tpu.memory_space<vmem>>, %arg6: memref<1x128xf32, #tpu.memory_space<vmem>>, %arg7: memref<128x128xbf16, #tpu.memory_space<vmem>>, %arg8: memref<1x128xf32, #tpu.memory_space<vmem>>, %arg9: memref<128x128xbf16, #tpu.memory_space<vmem>>, %arg10: memref<1x128xf32, #tpu.memory_space<vmem>>, %arg11: memref<128x32xbf16, #tpu.memory_space<vmem>>, %arg12: memref<1x32xf32, #tpu.memory_space<vmem>>, %arg13: memref<16x128xbf16, #tpu.memory_space<vmem>>, %arg14: memref<16x128xbf16, #tpu.memory_space<vmem>>, %arg15: memref<1x128xf32, #tpu.memory_space<vmem>>, %arg16: memref<128x128xbf16, #tpu.memory_space<vmem>>, %arg17: memref<1x128xf32, #tpu.memory_space<vmem>>, %arg18: memref<128x128xbf16, #tpu.memory_space<vmem>>, %arg19: memref<1x128xf32, #tpu.memory_space<vmem>>, %arg20: memref<128x128xbf16, #tpu.memory_space<vmem>>, %arg21: memref<1x128xf32, #tpu.memory_space<vmem>>, %arg22: memref<64x128xf32, #tpu.memory_space<vmem>>, %arg23: memref<64x32xf32, #tpu.memory_space<vmem>>) attributes {dimension_semantics = [#tpu.dimension_semantics<parallel>], iteration_bounds = array<i64: 4>, scalar_prefetch = 0 : i64, scratch_operands = 0 : i64, tpu.core_type = #tpu.core_type<tc>, window_params = [{transform_indices = @transform_0, window_bounds = array<i64: 64, 128>}, {transform_indices = @transform_1, window_bounds = array<i64: 64, 16>}, {transform_indices = @transform_2, window_bounds = array<i64: 64, 16>}, {pipeline_mode = #tpu.pipeline_mode<synchronous>, transform_indices = @transform_3, window_bounds = array<i64: 128, 128>}, {pipeline_mode = #tpu.pipeline_mode<synchronous>, transform_indices = @transform_4, window_bounds = array<i64: 16, 128>}, {pipeline_mode = #tpu.pipeline_mode<synchronous>, transform_indices = @transform_5, window_bounds = array<i64: 1, 128>}, {pipeline_mode = #tpu.pipeline_mode<synchronous>, transform_indices = @transform_6, window_bounds = array<i64: 128, 128>}, {pipeline_mode = #tpu.pipeline_mode<synchronous>, transform_indices = @transform_7, window_bounds = array<i64: 1, 128>}, {pipeline_mode = #tpu.pipeline_mode<synchronous>, transform_indices = @transform_8, window_bounds = array<i64: 128, 128>}, {pipeline_mode = #tpu.pipeline_mode<synchronous>, transform_indices = @transform_9, window_bounds = array<i64: 1, 128>}, {pipeline_mode = #tpu.pipeline_mode<synchronous>, transform_indices = @transform_10, window_bounds = array<i64: 128, 32>}, {pipeline_mode = #tpu.pipeline_mode<synchronous>, transform_indices = @transform_11, window_bounds = array<i64: 1, 32>}, {pipeline_mode = #tpu.pipeline_mode<synchronous>, transform_indices = @transform_12, window_bounds = array<i64: 16, 128>}, {pipeline_mode = #tpu.pipeline_mode<synchronous>, transform_indices = @transform_13, window_bounds = array<i64: 16, 128>}, {pipeline_mode = #tpu.pipeline_mode<synchronous>, transform_indices = @transform_14, window_bounds = array<i64: 1, 128>}, {pipeline_mode = #tpu.pipeline_mode<synchronous>, transform_indices = @transform_15, window_bounds = array<i64: 128, 128>}, {pipeline_mode = #tpu.pipeline_mode<synchronous>, transform_indices = @transform_16, window_bounds = array<i64: 1, 128>}, {pipeline_mode = #tpu.pipeline_mode<synchronous>, transform_indices = @transform_17, window_bounds = array<i64: 128, 128>}, {pipeline_mode = #tpu.pipeline_mode<synchronous>, transform_indices = @transform_18, window_bounds = array<i64: 1, 128>}, {pipeline_mode = #tpu.pipeline_mode<synchronous>, transform_indices = @transform_19, window_bounds = array<i64: 128, 128>}, {pipeline_mode = #tpu.pipeline_mode<synchronous>, transform_indices = @transform_20, window_bounds = array<i64: 1, 128>}, {transform_indices = @transform_21, window_bounds = array<i64: 64, 128>}, {transform_indices = @transform_22, window_bounds = array<i64: 64, 32>}]} {
    %c0 = arith.constant 0 : index
    %c0_0 = arith.constant 0 : index
    %0 = vector.load %arg1[%c0, %c0_0] : memref<64x128xbf16, #tpu.memory_space<vmem>>, vector<64x128xbf16>
    %c0_1 = arith.constant 0 : index
    %c0_2 = arith.constant 0 : index
    %1 = vector.load %arg4[%c0_1, %c0_2] : memref<128x128xbf16, #tpu.memory_space<vmem>>, vector<128x128xbf16>
    %cst = arith.constant dense<0.000000e+00> : vector<64x128xf32>
    %2 = tpu.matmul %0, %1, %cst {dimension_numbers = #tpu.dot_dimension_numbers<[1], [0], [0], [1], [0, 0, 1, 1], [], []>} : vector<64x128xbf16>, vector<128x128xbf16>, vector<64x128xf32> -> vector<64x128xf32>
    %c0_3 = arith.constant 0 : index
    %c0_4 = arith.constant 0 : index
    %3 = vector.load %arg2[%c0_3, %c0_4] : memref<64x16xbf16, #tpu.memory_space<vmem>>, vector<64x16xbf16>
    %c0_5 = arith.constant 0 : index
    %c0_6 = arith.constant 0 : index
    %4 = vector.load %arg5[%c0_5, %c0_6] : memref<16x128xbf16, #tpu.memory_space<vmem>>, vector<16x128xbf16>
    %cst_7 = arith.constant dense<0.000000e+00> : vector<64x128xf32>
    %5 = tpu.matmul %3, %4, %cst_7 {dimension_numbers = #tpu.dot_dimension_numbers<[1], [0], [0], [1], [0, 0, 1, 1], [], []>} : vector<64x16xbf16>, vector<16x128xbf16>, vector<64x128xf32> -> vector<64x128xf32>
    %6 = arith.addf %2, %5 : vector<64x128xf32>
    %c0_8 = arith.constant 0 : index
    %c0_9 = arith.constant 0 : index
    %7 = vector.load %arg6[%c0_8, %c0_9] : memref<1x128xf32, #tpu.memory_space<vmem>>, vector<1x128xf32>
    %8 = vector.broadcast %7 : vector<1x128xf32> to vector<64x128xf32>
    %9 = arith.addf %6, %8 : vector<64x128xf32>
    %cst_10 = arith.constant 0.000000e+00 : f32
    %10 = vector.broadcast %cst_10 : f32 to vector<64x128xf32>
    %11 = arith.maximumf %9, %10 : vector<64x128xf32>
    %12 = arith.truncf %11 : vector<64x128xf32> to vector<64x128xbf16>
    %c0_11 = arith.constant 0 : index
    %c0_12 = arith.constant 0 : index
    %13 = vector.load %arg7[%c0_11, %c0_12] : memref<128x128xbf16, #tpu.memory_space<vmem>>, vector<128x128xbf16>
    %cst_13 = arith.constant dense<0.000000e+00> : vector<64x128xf32>
    %14 = tpu.matmul %12, %13, %cst_13 {dimension_numbers = #tpu.dot_dimension_numbers<[1], [0], [0], [1], [0, 0, 1, 1], [], []>} : vector<64x128xbf16>, vector<128x128xbf16>, vector<64x128xf32> -> vector<64x128xf32>
    %c0_14 = arith.constant 0 : index
    %c0_15 = arith.constant 0 : index
    %15 = vector.load %arg8[%c0_14, %c0_15] : memref<1x128xf32, #tpu.memory_space<vmem>>, vector<1x128xf32>
    %16 = vector.broadcast %15 : vector<1x128xf32> to vector<64x128xf32>
    %17 = arith.addf %14, %16 : vector<64x128xf32>
    %cst_16 = arith.constant 0.000000e+00 : f32
    %18 = vector.broadcast %cst_16 : f32 to vector<64x128xf32>
    %19 = arith.maximumf %17, %18 : vector<64x128xf32>
    %20 = arith.truncf %19 : vector<64x128xf32> to vector<64x128xbf16>
    %c0_17 = arith.constant 0 : index
    %c0_18 = arith.constant 0 : index
    %21 = vector.load %arg9[%c0_17, %c0_18] : memref<128x128xbf16, #tpu.memory_space<vmem>>, vector<128x128xbf16>
    %cst_19 = arith.constant dense<0.000000e+00> : vector<64x128xf32>
    %22 = tpu.matmul %20, %21, %cst_19 {dimension_numbers = #tpu.dot_dimension_numbers<[1], [0], [0], [1], [0, 0, 1, 1], [], []>} : vector<64x128xbf16>, vector<128x128xbf16>, vector<64x128xf32> -> vector<64x128xf32>
    %c0_20 = arith.constant 0 : index
    %c0_21 = arith.constant 0 : index
    %23 = vector.load %arg10[%c0_20, %c0_21] : memref<1x128xf32, #tpu.memory_space<vmem>>, vector<1x128xf32>
    %24 = vector.broadcast %23 : vector<1x128xf32> to vector<64x128xf32>
    %25 = arith.addf %22, %24 : vector<64x128xf32>
    %cst_22 = arith.constant 0.000000e+00 : f32
    %26 = vector.broadcast %cst_22 : f32 to vector<64x128xf32>
    %27 = arith.maximumf %25, %26 : vector<64x128xf32>
    %28 = arith.truncf %27 : vector<64x128xf32> to vector<64x128xbf16>
    %c0_23 = arith.constant 0 : index
    %c0_24 = arith.constant 0 : index
    %29 = vector.load %arg11[%c0_23, %c0_24] : memref<128x32xbf16, #tpu.memory_space<vmem>>, vector<128x32xbf16>
    %cst_25 = arith.constant dense<0.000000e+00> : vector<64x32xf32>
    %30 = tpu.matmul %28, %29, %cst_25 {dimension_numbers = #tpu.dot_dimension_numbers<[1], [0], [0], [1], [0, 0, 1, 1], [], []>} : vector<64x128xbf16>, vector<128x32xbf16>, vector<64x32xf32> -> vector<64x32xf32>
    %c0_26 = arith.constant 0 : index
    %c0_27 = arith.constant 0 : index
    %31 = vector.load %arg12[%c0_26, %c0_27] : memref<1x32xf32, #tpu.memory_space<vmem>>, vector<1x32xf32>
    %32 = vector.broadcast %31 : vector<1x32xf32> to vector<64x32xf32>
    %33 = arith.addf %30, %32 : vector<64x32xf32>
    %c0_28 = arith.constant 0 : index
    %c0_29 = arith.constant 0 : index
    %34 = vector.load %arg23[%c0_28, %c0_29] : memref<64x32xf32, #tpu.memory_space<vmem>>, vector<64x32xf32>
    tpu.vector_store %arg23[%c0_28, %c0_29], %33 {strides = array<i32>} : memref<64x32xf32, #tpu.memory_space<vmem>>, vector<64x32xf32>,
    %35 = vector.extract_strided_slice %33 {offsets = [0, 0], sizes = [64, 16], strides = [1, 1]} : vector<64x32xf32> to vector<64x16xf32>
    %36 = vector.extract_strided_slice %33 {offsets = [0, 16], sizes = [64, 16], strides = [1, 1]} : vector<64x32xf32> to vector<64x16xf32>
    %c0_30 = arith.constant 0 : index
    %c0_31 = arith.constant 0 : index
    %37 = vector.load %arg3[%c0_30, %c0_31] : memref<64x16xf32, #tpu.memory_space<vmem>>, vector<64x16xf32>
    %cst_32 = arith.constant 5.000000e-01 : f32
    %38 = vector.broadcast %cst_32 : f32 to vector<64x16xf32>
    %39 = arith.mulf %38, %36 : vector<64x16xf32>
    %40 = math.exp %39 : vector<64x16xf32>
    %41 = arith.mulf %37, %40 : vector<64x16xf32>
    %42 = arith.addf %35, %41 : vector<64x16xf32>
    %43 = arith.truncf %42 : vector<64x16xf32> to vector<64x16xbf16>
    %c0_33 = arith.constant 0 : index
    %c0_34 = arith.constant 0 : index
    %44 = vector.load %arg13[%c0_33, %c0_34] : memref<16x128xbf16, #tpu.memory_space<vmem>>, vector<16x128xbf16>
    %cst_35 = arith.constant dense<0.000000e+00> : vector<64x128xf32>
    %45 = tpu.matmul %43, %44, %cst_35 {dimension_numbers = #tpu.dot_dimension_numbers<[1], [0], [0], [1], [0, 0, 1, 1], [], []>} : vector<64x16xbf16>, vector<16x128xbf16>, vector<64x128xf32> -> vector<64x128xf32>
    %c0_36 = arith.constant 0 : index
    %c0_37 = arith.constant 0 : index
    %46 = vector.load %arg2[%c0_36, %c0_37] : memref<64x16xbf16, #tpu.memory_space<vmem>>, vector<64x16xbf16>
    %c0_38 = arith.constant 0 : index
    %c0_39 = arith.constant 0 : index
    %47 = vector.load %arg14[%c0_38, %c0_39] : memref<16x128xbf16, #tpu.memory_space<vmem>>, vector<16x128xbf16>
    %cst_40 = arith.constant dense<0.000000e+00> : vector<64x128xf32>
    %48 = tpu.matmul %46, %47, %cst_40 {dimension_numbers = #tpu.dot_dimension_numbers<[1], [0], [0], [1], [0, 0, 1, 1], [], []>} : vector<64x16xbf16>, vector<16x128xbf16>, vector<64x128xf32> -> vector<64x128xf32>
    %49 = arith.addf %45, %48 : vector<64x128xf32>
    %c0_41 = arith.constant 0 : index
    %c0_42 = arith.constant 0 : index
    %50 = vector.load %arg15[%c0_41, %c0_42] : memref<1x128xf32, #tpu.memory_space<vmem>>, vector<1x128xf32>
    %51 = vector.broadcast %50 : vector<1x128xf32> to vector<64x128xf32>
    %52 = arith.addf %49, %51 : vector<64x128xf32>
    %cst_43 = arith.constant 0.000000e+00 : f32
    %53 = vector.broadcast %cst_43 : f32 to vector<64x128xf32>
    %54 = arith.maximumf %52, %53 : vector<64x128xf32>
    %55 = arith.truncf %54 : vector<64x128xf32> to vector<64x128xbf16>
    %c0_44 = arith.constant 0 : index
    %c0_45 = arith.constant 0 : index
    %56 = vector.load %arg16[%c0_44, %c0_45] : memref<128x128xbf16, #tpu.memory_space<vmem>>, vector<128x128xbf16>
    %cst_46 = arith.constant dense<0.000000e+00> : vector<64x128xf32>
    %57 = tpu.matmul %55, %56, %cst_46 {dimension_numbers = #tpu.dot_dimension_numbers<[1], [0], [0], [1], [0, 0, 1, 1], [], []>} : vector<64x128xbf16>, vector<128x128xbf16>, vector<64x128xf32> -> vector<64x128xf32>
    %c0_47 = arith.constant 0 : index
    %c0_48 = arith.constant 0 : index
    %58 = vector.load %arg17[%c0_47, %c0_48] : memref<1x128xf32, #tpu.memory_space<vmem>>, vector<1x128xf32>
    %59 = vector.broadcast %58 : vector<1x128xf32> to vector<64x128xf32>
    %60 = arith.addf %57, %59 : vector<64x128xf32>
    %cst_49 = arith.constant 0.000000e+00 : f32
    %61 = vector.broadcast %cst_49 : f32 to vector<64x128xf32>
    %62 = arith.maximumf %60, %61 : vector<64x128xf32>
    %63 = arith.truncf %62 : vector<64x128xf32> to vector<64x128xbf16>
    %c0_50 = arith.constant 0 : index
    %c0_51 = arith.constant 0 : index
    %64 = vector.load %arg18[%c0_50, %c0_51] : memref<128x128xbf16, #tpu.memory_space<vmem>>, vector<128x128xbf16>
    %cst_52 = arith.constant dense<0.000000e+00> : vector<64x128xf32>
    %65 = tpu.matmul %63, %64, %cst_52 {dimension_numbers = #tpu.dot_dimension_numbers<[1], [0], [0], [1], [0, 0, 1, 1], [], []>} : vector<64x128xbf16>, vector<128x128xbf16>, vector<64x128xf32> -> vector<64x128xf32>
    %c0_53 = arith.constant 0 : index
    %c0_54 = arith.constant 0 : index
    %66 = vector.load %arg19[%c0_53, %c0_54] : memref<1x128xf32, #tpu.memory_space<vmem>>, vector<1x128xf32>
    %67 = vector.broadcast %66 : vector<1x128xf32> to vector<64x128xf32>
    %68 = arith.addf %65, %67 : vector<64x128xf32>
    %cst_55 = arith.constant 0.000000e+00 : f32
    %69 = vector.broadcast %cst_55 : f32 to vector<64x128xf32>
    %70 = arith.maximumf %68, %69 : vector<64x128xf32>
    %71 = arith.truncf %70 : vector<64x128xf32> to vector<64x128xbf16>
    %c0_56 = arith.constant 0 : index
    %c0_57 = arith.constant 0 : index
    %72 = vector.load %arg20[%c0_56, %c0_57] : memref<128x128xbf16, #tpu.memory_space<vmem>>, vector<128x128xbf16>
    %cst_58 = arith.constant dense<0.000000e+00> : vector<64x128xf32>
    %73 = tpu.matmul %71, %72, %cst_58 {dimension_numbers = #tpu.dot_dimension_numbers<[1], [0], [0], [1], [0, 0, 1, 1], [], []>} : vector<64x128xbf16>, vector<128x128xbf16>, vector<64x128xf32> -> vector<64x128xf32>
    %c0_59 = arith.constant 0 : index
    %c0_60 = arith.constant 0 : index
    %74 = vector.load %arg21[%c0_59, %c0_60] : memref<1x128xf32, #tpu.memory_space<vmem>>, vector<1x128xf32>
    %75 = vector.broadcast %74 : vector<1x128xf32> to vector<64x128xf32>
    %76 = arith.addf %73, %75 : vector<64x128xf32>
    %cst_61 = arith.constant 0.000000e+00 : f32
    %77 = vector.broadcast %cst_61 : f32 to vector<64x128xf32>
    %78 = arith.subf %77, %76 : vector<64x128xf32>
    %79 = math.exp %78 : vector<64x128xf32>
    %cst_62 = arith.constant 1.000000e+00 : f32
    %80 = vector.broadcast %cst_62 : f32 to vector<64x128xf32>
    %81 = arith.addf %80, %79 : vector<64x128xf32>
    %82 = tpu.reciprocal %81 {approx = true} : vector<64x128xf32> -> vector<64x128xf32>
    %c0_63 = arith.constant 0 : index
    %c0_64 = arith.constant 0 : index
    %83 = vector.load %arg22[%c0_63, %c0_64] : memref<64x128xf32, #tpu.memory_space<vmem>>, vector<64x128xf32>
    tpu.vector_store %arg22[%c0_63, %c0_64], %82 {strides = array<i32>} : memref<64x128xf32, #tpu.memory_space<vmem>>, vector<64x128xf32>,
    return
  }
  func.func @transform_0(%arg0: i32) -> (i32, i32) {
    %c0_i32 = arith.constant 0 : i32
    %c0_i32_0 = arith.constant 0 : i32
    return %arg0, %c0_i32 : i32, i32
  }
  func.func @transform_1(%arg0: i32) -> (i32, i32) {
    %c0_i32 = arith.constant 0 : i32
    %c0_i32_0 = arith.constant 0 : i32
    return %arg0, %c0_i32 : i32, i32
  }
  func.func @transform_2(%arg0: i32) -> (i32, i32) {
    %c0_i32 = arith.constant 0 : i32
    %c0_i32_0 = arith.constant 0 : i32
    return %arg0, %c0_i32 : i32, i32
  }
  func.func @transform_3(%arg0: i32) -> (i32, i32) {
    %c0_i32 = arith.constant 0 : i32
    %c0_i32_0 = arith.constant 0 : i32
    %c0_i32_1 = arith.constant 0 : i32
    return %c0_i32, %c0_i32_0 : i32, i32
  }
  func.func @transform_4(%arg0: i32) -> (i32, i32) {
    %c0_i32 = arith.constant 0 : i32
    %c0_i32_0 = arith.constant 0 : i32
    %c0_i32_1 = arith.constant 0 : i32
    return %c0_i32, %c0_i32_0 : i32, i32
  }
  func.func @transform_5(%arg0: i32) -> (i32, i32) {
    %c0_i32 = arith.constant 0 : i32
    %c0_i32_0 = arith.constant 0 : i32
    %c0_i32_1 = arith.constant 0 : i32
    return %c0_i32, %c0_i32_0 : i32, i32
  }
  func.func @transform_6(%arg0: i32) -> (i32, i32) {
    %c0_i32 = arith.constant 0 : i32
    %c0_i32_0 = arith.constant 0 : i32
    %c0_i32_1 = arith.constant 0 : i32
    return %c0_i32, %c0_i32_0 : i32, i32
  }
  func.func @transform_7(%arg0: i32) -> (i32, i32) {
    %c0_i32 = arith.constant 0 : i32
    %c0_i32_0 = arith.constant 0 : i32
    %c0_i32_1 = arith.constant 0 : i32
    return %c0_i32, %c0_i32_0 : i32, i32
  }
  func.func @transform_8(%arg0: i32) -> (i32, i32) {
    %c0_i32 = arith.constant 0 : i32
    %c0_i32_0 = arith.constant 0 : i32
    %c0_i32_1 = arith.constant 0 : i32
    return %c0_i32, %c0_i32_0 : i32, i32
  }
  func.func @transform_9(%arg0: i32) -> (i32, i32) {
    %c0_i32 = arith.constant 0 : i32
    %c0_i32_0 = arith.constant 0 : i32
    %c0_i32_1 = arith.constant 0 : i32
    return %c0_i32, %c0_i32_0 : i32, i32
  }
  func.func @transform_10(%arg0: i32) -> (i32, i32) {
    %c0_i32 = arith.constant 0 : i32
    %c0_i32_0 = arith.constant 0 : i32
    %c0_i32_1 = arith.constant 0 : i32
    return %c0_i32, %c0_i32_0 : i32, i32
  }
  func.func @transform_11(%arg0: i32) -> (i32, i32) {
    %c0_i32 = arith.constant 0 : i32
    %c0_i32_0 = arith.constant 0 : i32
    %c0_i32_1 = arith.constant 0 : i32
    return %c0_i32, %c0_i32_0 : i32, i32
  }
  func.func @transform_12(%arg0: i32) -> (i32, i32) {
    %c0_i32 = arith.constant 0 : i32
    %c0_i32_0 = arith.constant 0 : i32
    %c0_i32_1 = arith.constant 0 : i32
    return %c0_i32, %c0_i32_0 : i32, i32
  }
  func.func @transform_13(%arg0: i32) -> (i32, i32) {
    %c0_i32 = arith.constant 0 : i32
    %c0_i32_0 = arith.constant 0 : i32
    %c0_i32_1 = arith.constant 0 : i32
    return %c0_i32, %c0_i32_0 : i32, i32
  }
  func.func @transform_14(%arg0: i32) -> (i32, i32) {
    %c0_i32 = arith.constant 0 : i32
    %c0_i32_0 = arith.constant 0 : i32
    %c0_i32_1 = arith.constant 0 : i32
    return %c0_i32, %c0_i32_0 : i32, i32
  }
  func.func @transform_15(%arg0: i32) -> (i32, i32) {
    %c0_i32 = arith.constant 0 : i32
    %c0_i32_0 = arith.constant 0 : i32
    %c0_i32_1 = arith.constant 0 : i32
    return %c0_i32, %c0_i32_0 : i32, i32
  }
  func.func @transform_16(%arg0: i32) -> (i32, i32) {
    %c0_i32 = arith.constant 0 : i32
    %c0_i32_0 = arith.constant 0 : i32
    %c0_i32_1 = arith.constant 0 : i32
    return %c0_i32, %c0_i32_0 : i32, i32
  }
  func.func @transform_17(%arg0: i32) -> (i32, i32) {
    %c0_i32 = arith.constant 0 : i32
    %c0_i32_0 = arith.constant 0 : i32
    %c0_i32_1 = arith.constant 0 : i32
    return %c0_i32, %c0_i32_0 : i32, i32
  }
  func.func @transform_18(%arg0: i32) -> (i32, i32) {
    %c0_i32 = arith.constant 0 : i32
    %c0_i32_0 = arith.constant 0 : i32
    %c0_i32_1 = arith.constant 0 : i32
    return %c0_i32, %c0_i32_0 : i32, i32
  }
  func.func @transform_19(%arg0: i32) -> (i32, i32) {
    %c0_i32 = arith.constant 0 : i32
    %c0_i32_0 = arith.constant 0 : i32
    %c0_i32_1 = arith.constant 0 : i32
    return %c0_i32, %c0_i32_0 : i32, i32
  }
  func.func @transform_20(%arg0: i32) -> (i32, i32) {
    %c0_i32 = arith.constant 0 : i32
    %c0_i32_0 = arith.constant 0 : i32
    %c0_i32_1 = arith.constant 0 : i32
    return %c0_i32, %c0_i32_0 : i32, i32
  }
  func.func @transform_21(%arg0: i32) -> (i32, i32) {
    %c0_i32 = arith.constant 0 : i32
    %c0_i32_0 = arith.constant 0 : i32
    return %arg0, %c0_i32 : i32, i32
  }
  func.func @transform_22(%arg0: i32) -> (i32, i32) {
    %c0_i32 = arith.constant 0 : i32
    %c0_i32_0 = arith.constant 0 : i32
    return %arg0, %c0_i32 : i32, i32
  }
}

</mosaic_0001>

<llo_original>
// kernel: tpu_custom_call.1
$region0: #{tpu_custom_call.1}
  #allocation0 [shape = 'u32[]', space=smem, size = 0x4, offset = 0x4, fixed_abs, tag = 'smem constant byte address 0x4 - core index']
  #allocation1 [shape = 'u32[144,128]{1,0:T(1,128)}', space=vmem, size = 0x12000, scoped, tag = 'internal scratch']
  %s0 = inlined_call_operand.vmem [shape: bf16[256,128], index: 0, kind: input, shape index: {}]
  %s1 = inlined_call_operand.vmem [shape: bf16[256,16], index: 1, kind: input, shape index: {}]
  %s2 = inlined_call_operand.vmem [shape: f32[256,16], index: 2, kind: input, shape index: {}]
  %s3 = inlined_call_operand.vmem [shape: bf16[128,128], index: 3, kind: input, shape index: {}]
  %s4 = inlined_call_operand.hbm [shape: bf16[16,128], index: 4, kind: input, shape index: {}]
  %s5 = inlined_call_operand.vmem [shape: f32[1,128], index: 5, kind: input, shape index: {}]
  %s6 = inlined_call_operand.vmem [shape: bf16[128,128], index: 6, kind: input, shape index: {}]
  %s7 = inlined_call_operand.vmem [shape: f32[1,128], index: 7, kind: input, shape index: {}]
  %s8 = inlined_call_operand.vmem [shape: bf16[128,128], index: 8, kind: input, shape index: {}]
  %s9 = inlined_call_operand.hbm [shape: f32[1,128], index: 9, kind: input, shape index: {}]
  %s10 = inlined_call_operand.vmem [shape: bf16[128,32], index: 10, kind: input, shape index: {}]
  %s11 = inlined_call_operand.hbm [shape: f32[1,32], index: 11, kind: input, shape index: {}]
  %s12 = inlined_call_operand.hbm [shape: bf16[16,128], index: 12, kind: input, shape index: {}]
  %s13 = inlined_call_operand.hbm [shape: bf16[16,128], index: 13, kind: input, shape index: {}]
  %s14 = inlined_call_operand.vmem [shape: f32[1,128], index: 14, kind: input, shape index: {}]
  %s15 = inlined_call_operand.vmem [shape: bf16[128,128], index: 15, kind: input, shape index: {}]
  %s16 = inlined_call_operand.vmem [shape: f32[1,128], index: 16, kind: input, shape index: {}]
  %s17 = inlined_call_operand.vmem [shape: bf16[128,128], index: 17, kind: input, shape index: {}]
  %s18 = inlined_call_operand.vmem [shape: f32[1,128], index: 18, kind: input, shape index: {}]
  %s19 = inlined_call_operand.vmem [shape: bf16[128,128], index: 19, kind: input, shape index: {}]
  %s20 = inlined_call_operand.vmem [shape: f32[1,128], index: 20, kind: input, shape index: {}]
  %s21 = inlined_call_operand.hbm [shape: f32[256,128], index: 21, kind: output, shape index: {0}]
  %s22 = inlined_call_operand.vmem [shape: f32[256,32], index: 22, kind: output, shape index: {1}]
  %23 = xla_tuple %s21, %s22
  %s24 = sld [smem:[#allocation0]]
  $region145: #{tpu_custom_call.1} parent=0
    _
  %s26 = ssub.s32 1, %s24
  %s27 = scalar_select 0, %s26, %s24
  $region1: #{tpu_custom_call.1} parent=0
    #allocation2 [shape = 'u8[4096]{0}', space=vmem, size = 0x1000, scoped, tag = 'input window, operand 4, single buffered']
    #allocation3 [shape = 's32[2]{0}', space=sflag, size = 0x8, scoped, tag = 'scoped memory for tpu_custom_call.1']
    #allocation4 [shape = 's32[2]{0}', space=sflag, size = 0x8, scoped, tag = 'scoped memory for tpu_custom_call.1']
    #allocation5 [shape = 'u8[512]{0}', space=vmem, size = 0x400, scoped, tag = 'input window, operand 9, single buffered']
    #allocation6 [shape = 's32[1]{0}', space=sflag, size = 0x4, scoped, tag = 'scoped memory for tpu_custom_call.1']
    #allocation7 [shape = 'u8[512]{0}', space=vmem, size = 0x400, scoped, tag = 'input window, operand 11, single buffered']
    #allocation8 [shape = 'u8[4096]{0}', space=vmem, size = 0x1000, scoped, tag = 'input window, operand 12, single buffered']
    #allocation9 [shape = 's32[1]{0}', space=sflag, size = 0x4, scoped, tag = 'scoped memory for tpu_custom_call.1']
    #allocation10 [shape = 'u8[4096]{0}', space=vmem, size = 0x1000, scoped, tag = 'input window, operand 13, single buffered']
    #allocation11 [shape = 'u8[65536]{0}', space=vmem, size = 0x10000, scoped, tag = 'output window, operand 0']
    %28 = vsyncpa [#allocation3], 0
    %29 = vsyncpa [#allocation6], 0
    %30 = vsyncpa [#allocation9], 0
    %31 = vsyncpa [#allocation4], 0
    %s32 = scalar_lea.sflag [#allocation4], 1
    %33 = vsyncpa %s32, 0
    loop: start=0, step=1, limit=6
    $region2: #{tpu_custom_call.1} parent=1 // loop_pre_header
      _
    $region3: #{tpu_custom_call.1} parent=1 // loop_header
      %s35 = sphi 0, %s39
      %p36 = scmp.ge.s32.totalorder %s35, 6
      %s45 = sphi 0, %s47
      %s48 = sphi 0, %s45
      %s49 = sphi 0, %s48
      %s65 = sphi 0, %s49
      %s71 = sphi 0, %s73
      %s74 = sphi 0, %s71
      %s75 = sphi 0, %s74
      %s91 = sphi 0, %s75
      %s97 = sphi 0, %s99
      %s100 = sphi 0, %s97
      %s101 = sphi 0, %s100
      %s117 = sphi 0, %s101
      %s121 = sphi 0, %s121
      %s123 = sphi 0, %s121
      %s124 = sphi 0, %s123
      %s138 = sphi 0, %s124
      %s142 = sphi 0, %s142
      %s144 = sphi 0, %s142
      %s145 = sphi 0, %s144
      %s159 = sphi 0, %s145
      %s163 = sphi 0, %s163
      %s165 = sphi 0, %s163
      %s166 = sphi 0, %s165
      %s180 = sphi 0, %s166
      %s184 = sphi 0, %s184
      %s186 = sphi 0, %s184
      %s187 = sphi 0, %s186
      %s201 = sphi 0, %s187
      %s205 = sphi 0, %s205
      %s207 = sphi 0, %s205
      %s208 = sphi 0, %s207
      %s222 = sphi 0, %s208
      %s226 = sphi 0, %s226
      %s228 = sphi 0, %s226
      %s229 = sphi 0, %s228
      %s243 = sphi 0, %s229
      %s247 = sphi 0, %s247
      %s249 = sphi 0, %s247
      %s250 = sphi 0, %s249
      %s264 = sphi 0, %s250
      %s268 = sphi 0, %s268
      %s270 = sphi 0, %s268
      %s271 = sphi 0, %s270
      %s285 = sphi 0, %s271
      %s289 = sphi 0, %s289
      %s291 = sphi 0, %s289
      %s292 = sphi 0, %s291
      %s306 = sphi 0, %s292
      %s310 = sphi 0, %s310
      %s312 = sphi 0, %s310
      %s313 = sphi 0, %s312
      %s327 = sphi 0, %s313
      %s331 = sphi 0, %s331
      %s333 = sphi 0, %s331
      %s334 = sphi 0, %s333
      %s348 = sphi 0, %s334
      %s352 = sphi 0, %s352
      %s354 = sphi 0, %s352
      %s355 = sphi 0, %s354
      %s369 = sphi 0, %s355
      %s373 = sphi 0, %s373
      %s375 = sphi 0, %s373
      %s376 = sphi 0, %s375
      %s390 = sphi 0, %s376
      %s394 = sphi 0, %s394
      %s396 = sphi 0, %s394
      %s397 = sphi 0, %s396
      %s411 = sphi 0, %s397
      %s415 = sphi 0, %s415
      %s417 = sphi 0, %s415
      %s418 = sphi 0, %s417
      %s432 = sphi 0, %s418
      %s436 = sphi 0, %s436
      %s438 = sphi 0, %s436
      %s439 = sphi 0, %s438
      %s453 = sphi 0, %s439
      %s457 = sphi 0, %s457
      %s459 = sphi 0, %s457
      %s460 = sphi 0, %s459
      %s474 = sphi 0, %s460
      %s478 = sphi 0, %s478
      %s480 = sphi 0, %s478
      %s481 = sphi 0, %s480
      %s495 = sphi 0, %s481
      %s501 = sphi 0, %s503
      %s504 = sphi 0, %s501
      %s505 = sphi 0, %s504
      %s521 = sphi 0, %s505
      %s527 = sphi 0, %s529
      %s530 = sphi 0, %s527
      %s531 = sphi 0, %s530
      %s547 = sphi 0, %s531
    $region4: #{tpu_custom_call.1} parent=1 // loop_header_branch
      %38 = sbr.rel (%p36) target = $region8
    $region5: #{tpu_custom_call.1} parent=1 // loop_body
      %s40 = ssub.s32 %s35, 1
      %s41 = ssub.s32 %s35, 2
      %s42 = sadd.s32 %s35, 1
      %s43 = ssub.s32 %s35, %s42
      %p44 = scmp.eq.s32.totalorder %s43, 0
      %s46 = sadd.s32 %s45, 1
      %s47 = scalar_select %p44, %s45, %s46
      %p50 = pneg %p44
      %p51 = scmp.eq.s32.totalorder %s35, 3
      %p52 = por %p50, %p51
      %p53 = scmp.ne.s32.totalorder %s45, %s48
      %p54 = scmp.eq.s32.totalorder %s35, 0
      %p55 = por %p53, %p54
      %p56 = scmp.ne.s32.totalorder %s45, %s48
      %p57 = scmp.eq.s32.totalorder %s40, 3
      %p58 = por %p56, %p57
      %p59 = scmp.ne.s32.totalorder %s48, %s49
      %p60 = scmp.eq.s32.totalorder %s40, 0
      %p61 = por %p59, %p60
      %p62 = scmp.ne.s32.totalorder %s48, %s49
      %p63 = scmp.eq.s32.totalorder %s41, 3
      %p64 = por %p62, %p63
      %p66 = scmp.ne.s32.totalorder %s49, %s65
      %p67 = scmp.eq.s32.totalorder %s41, 0
      %p68 = por %p66, %p67
      %s69 = ssub.s32 %s35, %s42
      %p70 = scmp.eq.s32.totalorder %s69, 0
      %s72 = sadd.s32 %s71, 1
      %s73 = scalar_select %p70, %s71, %s72
      %p76 = pneg %p70
      %p77 = scmp.eq.s32.totalorder %s35, 3
      %p78 = por %p76, %p77
      %p79 = scmp.ne.s32.totalorder %s71, %s74
      %p80 = scmp.eq.s32.totalorder %s35, 0
      %p81 = por %p79, %p80
      %p82 = scmp.ne.s32.totalorder %s71, %s74
      %p83 = scmp.eq.s32.totalorder %s40, 3
      %p84 = por %p82, %p83
      %p85 = scmp.ne.s32.totalorder %s74, %s75
      %p86 = scmp.eq.s32.totalorder %s40, 0
      %p87 = por %p85, %p86
      %p88 = scmp.ne.s32.totalorder %s74, %s75
      %p89 = scmp.eq.s32.totalorder %s41, 3
      %p90 = por %p88, %p89
      %p92 = scmp.ne.s32.totalorder %s75, %s91
      %p93 = scmp.eq.s32.totalorder %s41, 0
      %p94 = por %p92, %p93
      %s95 = ssub.s32 %s35, %s42
      %p96 = scmp.eq.s32.totalorder %s95, 0
      %s98 = sadd.s32 %s97, 1
      %s99 = scalar_select %p96, %s97, %s98
      %p102 = pneg %p96
      %p103 = scmp.eq.s32.totalorder %s35, 3
      %p104 = por %p102, %p103
      %p105 = scmp.ne.s32.totalorder %s97, %s100
      %p106 = scmp.eq.s32.totalorder %s35, 0
      %p107 = por %p105, %p106
      %p108 = scmp.ne.s32.totalorder %s97, %s100
      %p109 = scmp.eq.s32.totalorder %s40, 3
      %p110 = por %p108, %p109
      %p111 = scmp.ne.s32.totalorder %s100, %s101
      %p112 = scmp.eq.s32.totalorder %s40, 0
      %p113 = por %p111, %p112
      %p114 = scmp.ne.s32.totalorder %s100, %s101
      %p115 = scmp.eq.s32.totalorder %s41, 3
      %p116 = por %p114, %p115
      %p118 = scmp.ne.s32.totalorder %s101, %s117
      %p119 = scmp.eq.s32.totalorder %s41, 0
      %p120 = por %p118, %p119
      %s122 = sadd.s32 %s121, 1
      %p125 = scmp.eq.s32.totalorder %s35, 3
      %p126 = scmp.ne.s32.totalorder %s121, %s123
      %p127 = scmp.eq.s32.totalorder %s35, 0
      %p128 = por %p126, %p127
      %p129 = scmp.ne.s32.totalorder %s121, %s123
      %p130 = scmp.eq.s32.totalorder %s40, 3
      %p131 = por %p129, %p130
      %p132 = scmp.ne.s32.totalorder %s123, %s124
      %p133 = scmp.eq.s32.totalorder %s40, 0
      %p134 = por %p132, %p133
      %p135 = scmp.ne.s32.totalorder %s123, %s124
      %p136 = scmp.eq.s32.totalorder %s41, 3
      %p137 = por %p135, %p136
      %p139 = scmp.ne.s32.totalorder %s124, %s138
      %p140 = scmp.eq.s32.totalorder %s41, 0
      %p141 = por %p139, %p140
      %s143 = sadd.s32 %s142, 1
      %p146 = scmp.eq.s32.totalorder %s35, 3
      %p147 = scmp.ne.s32.totalorder %s142, %s144
      %p148 = scmp.eq.s32.totalorder %s35, 0
      %p149 = por %p147, %p148
      %p150 = scmp.ne.s32.totalorder %s142, %s144
      %p151 = scmp.eq.s32.totalorder %s40, 3
      %p152 = por %p150, %p151
      %p153 = scmp.ne.s32.totalorder %s144, %s145
      %p154 = scmp.eq.s32.totalorder %s40, 0
      %p155 = por %p153, %p154
      %p156 = scmp.ne.s32.totalorder %s144, %s145
      %p157 = scmp.eq.s32.totalorder %s41, 3
      %p158 = por %p156, %p157
      %p160 = scmp.ne.s32.totalorder %s145, %s159
      %p161 = scmp.eq.s32.totalorder %s41, 0
      %p162 = por %p160, %p161
      %s164 = sadd.s32 %s163, 1
      %p167 = scmp.eq.s32.totalorder %s35, 3
      %p168 = scmp.ne.s32.totalorder %s163, %s165
      %p169 = scmp.eq.s32.totalorder %s35, 0
      %p170 = por %p168, %p169
      %p171 = scmp.ne.s32.totalorder %s163, %s165
      %p172 = scmp.eq.s32.totalorder %s40, 3
      %p173 = por %p171, %p172
      %p174 = scmp.ne.s32.totalorder %s165, %s166
      %p175 = scmp.eq.s32.totalorder %s40, 0
      %p176 = por %p174, %p175
      %p177 = scmp.ne.s32.totalorder %s165, %s166
      %p178 = scmp.eq.s32.totalorder %s41, 3
      %p179 = por %p177, %p178
      %p181 = scmp.ne.s32.totalorder %s166, %s180
      %p182 = scmp.eq.s32.totalorder %s41, 0
      %p183 = por %p181, %p182
      %s185 = sadd.s32 %s184, 1
      %p188 = scmp.eq.s32.totalorder %s35, 3
      %p189 = scmp.ne.s32.totalorder %s184, %s186
      %p190 = scmp.eq.s32.totalorder %s35, 0
      %p191 = por %p189, %p190
      %p192 = scmp.ne.s32.totalorder %s184, %s186
      %p193 = scmp.eq.s32.totalorder %s40, 3
      %p194 = por %p192, %p193
      %p195 = scmp.ne.s32.totalorder %s186, %s187
      %p196 = scmp.eq.s32.totalorder %s40, 0
      %p197 = por %p195, %p196
      %p198 = scmp.ne.s32.totalorder %s186, %s187
      %p199 = scmp.eq.s32.totalorder %s41, 3
      %p200 = por %p198, %p199
      %p202 = scmp.ne.s32.totalorder %s187, %s201
      %p203 = scmp.eq.s32.totalorder %s41, 0
      %p204 = por %p202, %p203
      %s206 = sadd.s32 %s205, 1
      %p209 = scmp.eq.s32.totalorder %s35, 3
      %p210 = scmp.ne.s32.totalorder %s205, %s207
      %p211 = scmp.eq.s32.totalorder %s35, 0
      %p212 = por %p210, %p211
      %p213 = scmp.ne.s32.totalorder %s205, %s207
      %p214 = scmp.eq.s32.totalorder %s40, 3
      %p215 = por %p213, %p214
      %p216 = scmp.ne.s32.totalorder %s207, %s208
      %p217 = scmp.eq.s32.totalorder %s40, 0
      %p218 = por %p216, %p217
      %p219 = scmp.ne.s32.totalorder %s207, %s208
      %p220 = scmp.eq.s32.totalorder %s41, 3
      %p221 = por %p219, %p220
      %p223 = scmp.ne.s32.totalorder %s208, %s222
      %p224 = scmp.eq.s32.totalorder %s41, 0
      %p225 = por %p223, %p224
      %s227 = sadd.s32 %s226, 1
      %p230 = scmp.eq.s32.totalorder %s35, 3
      %p231 = scmp.ne.s32.totalorder %s226, %s228
      %p232 = scmp.eq.s32.totalorder %s35, 0
      %p233 = por %p231, %p232
      %p234 = scmp.ne.s32.totalorder %s226, %s228
      %p235 = scmp.eq.s32.totalorder %s40, 3
      %p236 = por %p234, %p235
      %p237 = scmp.ne.s32.totalorder %s228, %s229
      %p238 = scmp.eq.s32.totalorder %s40, 0
      %p239 = por %p237, %p238
      %p240 = scmp.ne.s32.totalorder %s228, %s229
      %p241 = scmp.eq.s32.totalorder %s41, 3
      %p242 = por %p240, %p241
      %p244 = scmp.ne.s32.totalorder %s229, %s243
      %p245 = scmp.eq.s32.totalorder %s41, 0
      %p246 = por %p244, %p245
      %s248 = sadd.s32 %s247, 1
      %p251 = scmp.eq.s32.totalorder %s35, 3
      %p252 = scmp.ne.s32.totalorder %s247, %s249
      %p253 = scmp.eq.s32.totalorder %s35, 0
      %p254 = por %p252, %p253
      %p255 = scmp.ne.s32.totalorder %s247, %s249
      %p256 = scmp.eq.s32.totalorder %s40, 3
      %p257 = por %p255, %p256
      %p258 = scmp.ne.s32.totalorder %s249, %s250
      %p259 = scmp.eq.s32.totalorder %s40, 0
      %p260 = por %p258, %p259
      %p261 = scmp.ne.s32.totalorder %s249, %s250
      %p262 = scmp.eq.s32.totalorder %s41, 3
      %p263 = por %p261, %p262
      %p265 = scmp.ne.s32.totalorder %s250, %s264
      %p266 = scmp.eq.s32.totalorder %s41, 0
      %p267 = por %p265, %p266
      %s269 = sadd.s32 %s268, 1
      %p272 = scmp.eq.s32.totalorder %s35, 3
      %p273 = scmp.ne.s32.totalorder %s268, %s270
      %p274 = scmp.eq.s32.totalorder %s35, 0
      %p275 = por %p273, %p274
      %p276 = scmp.ne.s32.totalorder %s268, %s270
      %p277 = scmp.eq.s32.totalorder %s40, 3
      %p278 = por %p276, %p277
      %p279 = scmp.ne.s32.totalorder %s270, %s271
      %p280 = scmp.eq.s32.totalorder %s40, 0
      %p281 = por %p279, %p280
      %p282 = scmp.ne.s32.totalorder %s270, %s271
      %p283 = scmp.eq.s32.totalorder %s41, 3
      %p284 = por %p282, %p283
      %p286 = scmp.ne.s32.totalorder %s271, %s285
      %p287 = scmp.eq.s32.totalorder %s41, 0
      %p288 = por %p286, %p287
      %s290 = sadd.s32 %s289, 1
      %p293 = scmp.eq.s32.totalorder %s35, 3
      %p294 = scmp.ne.s32.totalorder %s289, %s291
      %p295 = scmp.eq.s32.totalorder %s35, 0
      %p296 = por %p294, %p295
      %p297 = scmp.ne.s32.totalorder %s289, %s291
      %p298 = scmp.eq.s32.totalorder %s40, 3
      %p299 = por %p297, %p298
      %p300 = scmp.ne.s32.totalorder %s291, %s292
      %p301 = scmp.eq.s32.totalorder %s40, 0
      %p302 = por %p300, %p301
      %p303 = scmp.ne.s32.totalorder %s291, %s292
      %p304 = scmp.eq.s32.totalorder %s41, 3
      %p305 = por %p303, %p304
      %p307 = scmp.ne.s32.totalorder %s292, %s306
      %p308 = scmp.eq.s32.totalorder %s41, 0
      %p309 = por %p307, %p308
      %s311 = sadd.s32 %s310, 1
      %p314 = scmp.eq.s32.totalorder %s35, 3
      %p315 = scmp.ne.s32.totalorder %s310, %s312
      %p316 = scmp.eq.s32.totalorder %s35, 0
      %p317 = por %p315, %p316
      %p318 = scmp.ne.s32.totalorder %s310, %s312
      %p319 = scmp.eq.s32.totalorder %s40, 3
      %p320 = por %p318, %p319
      %p321 = scmp.ne.s32.totalorder %s312, %s313
      %p322 = scmp.eq.s32.totalorder %s40, 0
      %p323 = por %p321, %p322
      %p324 = scmp.ne.s32.totalorder %s312, %s313
      %p325 = scmp.eq.s32.totalorder %s41, 3
      %p326 = por %p324, %p325
      %p328 = scmp.ne.s32.totalorder %s313, %s327
      %p329 = scmp.eq.s32.totalorder %s41, 0
      %p330 = por %p328, %p329
      %s332 = sadd.s32 %s331, 1
      %p335 = scmp.eq.s32.totalorder %s35, 3
      %p336 = scmp.ne.s32.totalorder %s331, %s333
      %p337 = scmp.eq.s32.totalorder %s35, 0
      %p338 = por %p336, %p337
      %p339 = scmp.ne.s32.totalorder %s331, %s333
      %p340 = scmp.eq.s32.totalorder %s40, 3
      %p341 = por %p339, %p340
      %p342 = scmp.ne.s32.totalorder %s333, %s334
      %p343 = scmp.eq.s32.totalorder %s40, 0
      %p344 = por %p342, %p343
      %p345 = scmp.ne.s32.totalorder %s333, %s334
      %p346 = scmp.eq.s32.totalorder %s41, 3
      %p347 = por %p345, %p346
      %p349 = scmp.ne.s32.totalorder %s334, %s348
      %p350 = scmp.eq.s32.totalorder %s41, 0
      %p351 = por %p349, %p350
      %s353 = sadd.s32 %s352, 1
      %p356 = scmp.eq.s32.totalorder %s35, 3
      %p357 = scmp.ne.s32.totalorder %s352, %s354
      %p358 = scmp.eq.s32.totalorder %s35, 0
      %p359 = por %p357, %p358
      %p360 = scmp.ne.s32.totalorder %s352, %s354
      %p361 = scmp.eq.s32.totalorder %s40, 3
      %p362 = por %p360, %p361
      %p363 = scmp.ne.s32.totalorder %s354, %s355
      %p364 = scmp.eq.s32.totalorder %s40, 0
      %p365 = por %p363, %p364
      %p366 = scmp.ne.s32.totalorder %s354, %s355
      %p367 = scmp.eq.s32.totalorder %s41, 3
      %p368 = por %p366, %p367
      %p370 = scmp.ne.s32.totalorder %s355, %s369
      %p371 = scmp.eq.s32.totalorder %s41, 0
      %p372 = por %p370, %p371
      %s374 = sadd.s32 %s373, 1
      %p377 = scmp.eq.s32.totalorder %s35, 3
      %p378 = scmp.ne.s32.totalorder %s373, %s375
      %p379 = scmp.eq.s32.totalorder %s35, 0
      %p380 = por %p378, %p379
      %p381 = scmp.ne.s32.totalorder %s373, %s375
      %p382 = scmp.eq.s32.totalorder %s40, 3
      %p383 = por %p381, %p382
      %p384 = scmp.ne.s32.totalorder %s375, %s376
      %p385 = scmp.eq.s32.totalorder %s40, 0
      %p386 = por %p384, %p385
      %p387 = scmp.ne.s32.totalorder %s375, %s376
      %p388 = scmp.eq.s32.totalorder %s41, 3
      %p389 = por %p387, %p388
      %p391 = scmp.ne.s32.totalorder %s376, %s390
      %p392 = scmp.eq.s32.totalorder %s41, 0
      %p393 = por %p391, %p392
      %s395 = sadd.s32 %s394, 1
      %p398 = scmp.eq.s32.totalorder %s35, 3
      %p399 = scmp.ne.s32.totalorder %s394, %s396
      %p400 = scmp.eq.s32.totalorder %s35, 0
      %p401 = por %p399, %p400
      %p402 = scmp.ne.s32.totalorder %s394, %s396
      %p403 = scmp.eq.s32.totalorder %s40, 3
      %p404 = por %p402, %p403
      %p405 = scmp.ne.s32.totalorder %s396, %s397
      %p406 = scmp.eq.s32.totalorder %s40, 0
      %p407 = por %p405, %p406
      %p408 = scmp.ne.s32.totalorder %s396, %s397
      %p409 = scmp.eq.s32.totalorder %s41, 3
      %p410 = por %p408, %p409
      %p412 = scmp.ne.s32.totalorder %s397, %s411
      %p413 = scmp.eq.s32.totalorder %s41, 0
      %p414 = por %p412, %p413
      %s416 = sadd.s32 %s415, 1
      %p419 = scmp.eq.s32.totalorder %s35, 3
      %p420 = scmp.ne.s32.totalorder %s415, %s417
      %p421 = scmp.eq.s32.totalorder %s35, 0
      %p422 = por %p420, %p421
      %p423 = scmp.ne.s32.totalorder %s415, %s417
      %p424 = scmp.eq.s32.totalorder %s40, 3
      %p425 = por %p423, %p424
      %p426 = scmp.ne.s32.totalorder %s417, %s418
      %p427 = scmp.eq.s32.totalorder %s40, 0
      %p428 = por %p426, %p427
      %p429 = scmp.ne.s32.totalorder %s417, %s418
      %p430 = scmp.eq.s32.totalorder %s41, 3
      %p431 = por %p429, %p430
      %p433 = scmp.ne.s32.totalorder %s418, %s432
      %p434 = scmp.eq.s32.totalorder %s41, 0
      %p435 = por %p433, %p434
      %s437 = sadd.s32 %s436, 1
      %p440 = scmp.eq.s32.totalorder %s35, 3
      %p441 = scmp.ne.s32.totalorder %s436, %s438
      %p442 = scmp.eq.s32.totalorder %s35, 0
      %p443 = por %p441, %p442
      %p444 = scmp.ne.s32.totalorder %s436, %s438
      %p445 = scmp.eq.s32.totalorder %s40, 3
      %p446 = por %p444, %p445
      %p447 = scmp.ne.s32.totalorder %s438, %s439
      %p448 = scmp.eq.s32.totalorder %s40, 0
      %p449 = por %p447, %p448
      %p450 = scmp.ne.s32.totalorder %s438, %s439
      %p451 = scmp.eq.s32.totalorder %s41, 3
      %p452 = por %p450, %p451
      %p454 = scmp.ne.s32.totalorder %s439, %s453
      %p455 = scmp.eq.s32.totalorder %s41, 0
      %p456 = por %p454, %p455
      %s458 = sadd.s32 %s457, 1
      %p461 = scmp.eq.s32.totalorder %s35, 3
      %p462 = scmp.ne.s32.totalorder %s457, %s459
      %p463 = scmp.eq.s32.totalorder %s35, 0
      %p464 = por %p462, %p463
      %p465 = scmp.ne.s32.totalorder %s457, %s459
      %p466 = scmp.eq.s32.totalorder %s40, 3
      %p467 = por %p465, %p466
      %p468 = scmp.ne.s32.totalorder %s459, %s460
      %p469 = scmp.eq.s32.totalorder %s40, 0
      %p470 = por %p468, %p469
      %p471 = scmp.ne.s32.totalorder %s459, %s460
      %p472 = scmp.eq.s32.totalorder %s41, 3
      %p473 = por %p471, %p472
      %p475 = scmp.ne.s32.totalorder %s460, %s474
      %p476 = scmp.eq.s32.totalorder %s41, 0
      %p477 = por %p475, %p476
      %s479 = sadd.s32 %s478, 1
      %p482 = scmp.eq.s32.totalorder %s35, 3
      %p483 = scmp.ne.s32.totalorder %s478, %s480
      %p484 = scmp.eq.s32.totalorder %s35, 0
      %p485 = por %p483, %p484
      %p486 = scmp.ne.s32.totalorder %s478, %s480
      %p487 = scmp.eq.s32.totalorder %s40, 3
      %p488 = por %p486, %p487
      %p489 = scmp.ne.s32.totalorder %s480, %s481
      %p490 = scmp.eq.s32.totalorder %s40, 0
      %p491 = por %p489, %p490
      %p492 = scmp.ne.s32.totalorder %s480, %s481
      %p493 = scmp.eq.s32.totalorder %s41, 3
      %p494 = por %p492, %p493
      %p496 = scmp.ne.s32.totalorder %s481, %s495
      %p497 = scmp.eq.s32.totalorder %s41, 0
      %p498 = por %p496, %p497
      %s499 = ssub.s32 %s35, %s42
      %p500 = scmp.eq.s32.totalorder %s499, 0
      %s502 = sadd.s32 %s501, 1
      %s503 = scalar_select %p500, %s501, %s502
      %p506 = pneg %p500
      %p507 = scmp.eq.s32.totalorder %s35, 3
      %p508 = por %p506, %p507
      %p509 = scmp.ne.s32.totalorder %s501, %s504
      %p510 = scmp.eq.s32.totalorder %s35, 0
      %p511 = por %p509, %p510
      %p512 = scmp.ne.s32.totalorder %s501, %s504
      %p513 = scmp.eq.s32.totalorder %s40, 3
      %p514 = por %p512, %p513
      %p515 = scmp.ne.s32.totalorder %s504, %s505
      %p516 = scmp.eq.s32.totalorder %s40, 0
      %p517 = por %p515, %p516
      %p518 = scmp.ne.s32.totalorder %s504, %s505
      %p519 = scmp.eq.s32.totalorder %s41, 3
      %p520 = por %p518, %p519
      %p522 = scmp.ne.s32.totalorder %s505, %s521
      %p523 = scmp.eq.s32.totalorder %s41, 0
      %p524 = por %p522, %p523
      %s525 = ssub.s32 %s35, %s42
      %p526 = scmp.eq.s32.totalorder %s525, 0
      %s528 = sadd.s32 %s527, 1
      %s529 = scalar_select %p526, %s527, %s528
      %p532 = pneg %p526
      %p533 = scmp.eq.s32.totalorder %s35, 3
      %p534 = por %p532, %p533
      %p535 = scmp.ne.s32.totalorder %s527, %s530
      %p536 = scmp.eq.s32.totalorder %s35, 0
      %p537 = por %p535, %p536
      %p538 = scmp.ne.s32.totalorder %s527, %s530
      %p539 = scmp.eq.s32.totalorder %s40, 3
      %p540 = por %p538, %p539
      %p541 = scmp.ne.s32.totalorder %s530, %s531
      %p542 = scmp.eq.s32.totalorder %s40, 0
      %p543 = por %p541, %p542
      %p544 = scmp.ne.s32.totalorder %s530, %s531
      %p545 = scmp.eq.s32.totalorder %s41, 3
      %p546 = por %p544, %p545
      %p548 = scmp.ne.s32.totalorder %s531, %s547
      %p549 = scmp.eq.s32.totalorder %s41, 0
      %p550 = por %p548, %p549
      %p551 = scmp.le.s32.totalorder 1, %s35
      %p552 = scmp.lt.s32.totalorder %s35, 5
      %p553 = pnand %p551, %p552
      %p554 = pneg %p553
      // Predicated region
      $region9: #{tpu_custom_call.1} parent=5 // pred_check
        _
      $region10: #{tpu_custom_call.1} parent=5 // pred_check_branch
        %556 = sbr.rel (%p553) target = $region12
      $region11: #{tpu_custom_call.1} parent=5 // pred_region
        %s557 = ssub.s32 %s35, 1
        // Predicated region
        $region13: #{tpu_custom_call.1} parent=11 // pred_check
          %p558 = pneg %p134
        $region14: #{tpu_custom_call.1} parent=11 // pred_check_branch
          %560 = sbr.rel (%p558) target = $region16
        $region15: #{tpu_custom_call.1} parent=11 // pred_region
          _
        $region16: #{tpu_custom_call.1} parent=11 // pred_fallthru
          _
        // Predicated region
        $region17: #{tpu_custom_call.1} parent=11 // pred_check
          %p561 = pneg %p155
        $region18: #{tpu_custom_call.1} parent=11 // pred_check_branch
          %563 = sbr.rel (%p561) target = $region20
        $region19: #{tpu_custom_call.1} parent=11 // pred_region
          %s565 = ssub.s32 128, 128
          %566 = vsyncadd [#allocation3], %s565
          %s567 = sshll.u32 [#allocation2], 4
          %s568 = int_to_ptr.vmem [resolvable:$true] %s567
          %573 = dma.hbm_to_vmem [thread:$0]  %s4, 128, %s568, [#allocation3], 64, 64, 4
        $region20: #{tpu_custom_call.1} parent=11 // pred_fallthru
          _
        // Predicated region
        $region21: #{tpu_custom_call.1} parent=11 // pred_check
          %p574 = pneg %p176
        $region22: #{tpu_custom_call.1} parent=11 // pred_check_branch
          %576 = sbr.rel (%p574) target = $region24
        $region23: #{tpu_custom_call.1} parent=11 // pred_region
          _
        $region24: #{tpu_custom_call.1} parent=11 // pred_fallthru
          _
        // Predicated region
        $region25: #{tpu_custom_call.1} parent=11 // pred_check
          %p577 = pneg %p197
        $region26: #{tpu_custom_call.1} parent=11 // pred_check_branch
          %579 = sbr.rel (%p577) target = $region28
        $region27: #{tpu_custom_call.1} parent=11 // pred_region
          _
        $region28: #{tpu_custom_call.1} parent=11 // pred_fallthru
          _
        // Predicated region
        $region29: #{tpu_custom_call.1} parent=11 // pred_check
          %p580 = pneg %p218
        $region30: #{tpu_custom_call.1} parent=11 // pred_check_branch
          %582 = sbr.rel (%p580) target = $region32
        $region31: #{tpu_custom_call.1} parent=11 // pred_region
          _
        $region32: #{tpu_custom_call.1} parent=11 // pred_fallthru
          _
        // Predicated region
        $region33: #{tpu_custom_call.1} parent=11 // pred_check
          %p583 = pneg %p239
        $region34: #{tpu_custom_call.1} parent=11 // pred_check_branch
          %585 = sbr.rel (%p583) target = $region36
        $region35: #{tpu_custom_call.1} parent=11 // pred_region
          _
        $region36: #{tpu_custom_call.1} parent=11 // pred_fallthru
          _
        // Predicated region
        $region37: #{tpu_custom_call.1} parent=11 // pred_check
          %p586 = pneg %p260
        $region38: #{tpu_custom_call.1} parent=11 // pred_check_branch
          %588 = sbr.rel (%p586) target = $region40
        $region39: #{tpu_custom_call.1} parent=11 // pred_region
          %s590 = ssub.s32 16, 16
          %591 = vsyncadd [#allocation6], %s590
          %s593 = sshll.u32 [#allocation5], 4
          %s594 = int_to_ptr.vmem [resolvable:$true] %s593
          %596 = dma.hbm_to_vmem [thread:$0]  %s9, 16, %s594, [#allocation6]
        $region40: #{tpu_custom_call.1} parent=11 // pred_fallthru
          _
        // Predicated region
        $region41: #{tpu_custom_call.1} parent=11 // pred_check
          %p597 = pneg %p281
        $region42: #{tpu_custom_call.1} parent=11 // pred_check_branch
          %599 = sbr.rel (%p597) target = $region44
        $region43: #{tpu_custom_call.1} parent=11 // pred_region
          _
        $region44: #{tpu_custom_call.1} parent=11 // pred_fallthru
          _
        // Predicated region
        $region45: #{tpu_custom_call.1} parent=11 // pred_check
          %p600 = pneg %p302
        $region46: #{tpu_custom_call.1} parent=11 // pred_check_branch
          %602 = sbr.rel (%p600) target = $region48
        $region47: #{tpu_custom_call.1} parent=11 // pred_region
          %s604 = ssub.s32 16, 16
          %605 = vsyncadd [#allocation6], %s604
          %s607 = sshll.u32 [#allocation7], 4
          %s608 = int_to_ptr.vmem [resolvable:$true] %s607
          %610 = dma.hbm_to_vmem [thread:$0]  %s11, 16, %s608, [#allocation6]
        $region48: #{tpu_custom_call.1} parent=11 // pred_fallthru
          _
        // Predicated region
        $region49: #{tpu_custom_call.1} parent=11 // pred_check
          %p611 = pneg %p323
        $region50: #{tpu_custom_call.1} parent=11 // pred_check_branch
          %613 = sbr.rel (%p611) target = $region52
        $region51: #{tpu_custom_call.1} parent=11 // pred_region
          %s615 = ssub.s32 128, 128
          %616 = vsyncadd [#allocation9], %s615
          %s617 = sshll.u32 [#allocation8], 4
          %s618 = int_to_ptr.vmem [resolvable:$true] %s617
          %623 = dma.hbm_to_vmem [thread:$0]  %s12, 128, %s618, [#allocation9], 64, 64, 4
        $region52: #{tpu_custom_call.1} parent=11 // pred_fallthru
          _
        // Predicated region
        $region53: #{tpu_custom_call.1} parent=11 // pred_check
          %p624 = pneg %p344
        $region54: #{tpu_custom_call.1} parent=11 // pred_check_branch
          %626 = sbr.rel (%p624) target = $region56
        $region55: #{tpu_custom_call.1} parent=11 // pred_region
          %s628 = ssub.s32 128, 128
          %629 = vsyncadd [#allocation9], %s628
          %s630 = sshll.u32 [#allocation10], 4
          %s631 = int_to_ptr.vmem [resolvable:$true] %s630
          %636 = dma.hbm_to_vmem [thread:$0]  %s13, 128, %s631, [#allocation9], 64, 64, 4
        $region56: #{tpu_custom_call.1} parent=11 // pred_fallthru
          _
        // Predicated region
        $region57: #{tpu_custom_call.1} parent=11 // pred_check
          %p637 = pneg %p365
        $region58: #{tpu_custom_call.1} parent=11 // pred_check_branch
          %639 = sbr.rel (%p637) target = $region60
        $region59: #{tpu_custom_call.1} parent=11 // pred_region
          _
        $region60: #{tpu_custom_call.1} parent=11 // pred_fallthru
          _
        // Predicated region
        $region61: #{tpu_custom_call.1} parent=11 // pred_check
          %p640 = pneg %p386
        $region62: #{tpu_custom_call.1} parent=11 // pred_check_branch
          %642 = sbr.rel (%p640) target = $region64
        $region63: #{tpu_custom_call.1} parent=11 // pred_region
          _
        $region64: #{tpu_custom_call.1} parent=11 // pred_fallthru
          _
        // Predicated region
        $region65: #{tpu_custom_call.1} parent=11 // pred_check
          %p643 = pneg %p407
        $region66: #{tpu_custom_call.1} parent=11 // pred_check_branch
          %645 = sbr.rel (%p643) target = $region68
        $region67: #{tpu_custom_call.1} parent=11 // pred_region
          _
        $region68: #{tpu_custom_call.1} parent=11 // pred_fallthru
          _
        // Predicated region
        $region69: #{tpu_custom_call.1} parent=11 // pred_check
          %p646 = pneg %p428
        $region70: #{tpu_custom_call.1} parent=11 // pred_check_branch
          %648 = sbr.rel (%p646) target = $region72
        $region71: #{tpu_custom_call.1} parent=11 // pred_region
          _
        $region72: #{tpu_custom_call.1} parent=11 // pred_fallthru
          _
        // Predicated region
        $region73: #{tpu_custom_call.1} parent=11 // pred_check
          %p649 = pneg %p449
        $region74: #{tpu_custom_call.1} parent=11 // pred_check_branch
          %651 = sbr.rel (%p649) target = $region76
        $region75: #{tpu_custom_call.1} parent=11 // pred_region
          _
        $region76: #{tpu_custom_call.1} parent=11 // pred_fallthru
          _
        // Predicated region
        $region77: #{tpu_custom_call.1} parent=11 // pred_check
          %p652 = pneg %p470
        $region78: #{tpu_custom_call.1} parent=11 // pred_check_branch
          %654 = sbr.rel (%p652) target = $region80
        $region79: #{tpu_custom_call.1} parent=11 // pred_region
          _
        $region80: #{tpu_custom_call.1} parent=11 // pred_fallthru
          _
        // Predicated region
        $region81: #{tpu_custom_call.1} parent=11 // pred_check
          %p655 = pneg %p491
        $region82: #{tpu_custom_call.1} parent=11 // pred_check_branch
          %657 = sbr.rel (%p655) target = $region84
        $region83: #{tpu_custom_call.1} parent=11 // pred_region
          _
        $region84: #{tpu_custom_call.1} parent=11 // pred_fallthru
          _
      $region12: #{tpu_custom_call.1} parent=5 // pred_fallthru
        _
      %p658 = scmp.lt.s32.totalorder %s35, 4
      // Predicated region
      $region85: #{tpu_custom_call.1} parent=5 // pred_check
        %p659 = pneg %p658
      $region86: #{tpu_custom_call.1} parent=5 // pred_check_branch
        %661 = sbr.rel (%p659) target = $region88
      $region87: #{tpu_custom_call.1} parent=5 // pred_region
        // Predicated region
        $region89: #{tpu_custom_call.1} parent=87 // pred_check
          %p662 = pneg %p55
        $region90: #{tpu_custom_call.1} parent=87 // pred_check_branch
          %664 = sbr.rel (%p662) target = $region92
        $region91: #{tpu_custom_call.1} parent=87 // pred_region
          %s665 = smul.u32 8, %s35
          %p666 = scmp.lt.s32.totalorder %s665, 31
          %s667 = scalar_select %p666, %s665, 31
          %s668 = smul.addr %s667, 4
          %s669 = scalar_lea.vmem %s0, %s668
          %s670 = smul.u32 8, %s35
        $region92: #{tpu_custom_call.1} parent=87 // pred_fallthru
          _
        // Predicated region
        $region93: #{tpu_custom_call.1} parent=87 // pred_check
          %p671 = pneg %p81
        $region94: #{tpu_custom_call.1} parent=87 // pred_check_branch
          %673 = sbr.rel (%p671) target = $region96
        $region95: #{tpu_custom_call.1} parent=87 // pred_region
          %s674 = smul.u32 8, %s35
          %p675 = scmp.lt.s32.totalorder %s674, 31
          %s676 = scalar_select %p675, %s674, 31
          %s677 = smul.addr %s676, 4
          %s678 = scalar_lea.vmem %s1, %s677
          %s679 = smul.u32 8, %s35
        $region96: #{tpu_custom_call.1} parent=87 // pred_fallthru
          _
        // Predicated region
        $region97: #{tpu_custom_call.1} parent=87 // pred_check
          %p680 = pneg %p107
        $region98: #{tpu_custom_call.1} parent=87 // pred_check_branch
          %682 = sbr.rel (%p680) target = $region100
        $region99: #{tpu_custom_call.1} parent=87 // pred_region
          %s683 = smul.u32 8, %s35
          %p684 = scmp.lt.s32.totalorder %s683, 31
          %s685 = scalar_select %p684, %s683, 31
          %s686 = smul.addr %s685, 8
          %s687 = scalar_lea.vmem %s2, %s686
          %s688 = smul.u32 8, %s35
        $region100: #{tpu_custom_call.1} parent=87 // pred_fallthru
          _
      $region88: #{tpu_custom_call.1} parent=5 // pred_fallthru
        _
      %p689 = scmp.le.s32.totalorder 1, %s35
      %p690 = scmp.lt.s32.totalorder %s35, 5
      %p691 = pnand %p689, %p690
      %p692 = pneg %p691
      // Predicated region
      $region101: #{tpu_custom_call.1} parent=5 // pred_check
        _
      $region102: #{tpu_custom_call.1} parent=5 // pred_check_branch
        %694 = sbr.rel (%p691) target = $region104
      $region103: #{tpu_custom_call.1} parent=5 // pred_region
        %s695 = ssub.s32 %s35, 1
        // Predicated region
        $region105: #{tpu_custom_call.1} parent=103 // pred_check
          %p696 = pneg %p155
        $region106: #{tpu_custom_call.1} parent=103 // pred_check_branch
          %698 = sbr.rel (%p696) target = $region108
        $region107: #{tpu_custom_call.1} parent=103 // pred_region
          %699 = dma.done [#allocation3], 128
        $region108: #{tpu_custom_call.1} parent=103 // pred_fallthru
          _
        // Predicated region
        $region109: #{tpu_custom_call.1} parent=103 // pred_check
          %p700 = pneg %p260
        $region110: #{tpu_custom_call.1} parent=103 // pred_check_branch
          %702 = sbr.rel (%p700) target = $region112
        $region111: #{tpu_custom_call.1} parent=103 // pred_region
          %703 = dma.done [#allocation6], 16
        $region112: #{tpu_custom_call.1} parent=103 // pred_fallthru
          _
        // Predicated region
        $region113: #{tpu_custom_call.1} parent=103 // pred_check
          %p704 = pneg %p302
        $region114: #{tpu_custom_call.1} parent=103 // pred_check_branch
          %706 = sbr.rel (%p704) target = $region116
        $region115: #{tpu_custom_call.1} parent=103 // pred_region
          %707 = dma.done [#allocation6], 16
        $region116: #{tpu_custom_call.1} parent=103 // pred_fallthru
          _
        // Predicated region
        $region117: #{tpu_custom_call.1} parent=103 // pred_check
          %p708 = pneg %p323
        $region118: #{tpu_custom_call.1} parent=103 // pred_check_branch
          %710 = sbr.rel (%p708) target = $region120
        $region119: #{tpu_custom_call.1} parent=103 // pred_region
          %711 = dma.done [#allocation9], 128
        $region120: #{tpu_custom_call.1} parent=103 // pred_fallthru
          _
        // Predicated region
        $region121: #{tpu_custom_call.1} parent=103 // pred_check
          %p712 = pneg %p344
        $region122: #{tpu_custom_call.1} parent=103 // pred_check_branch
          %714 = sbr.rel (%p712) target = $region124
        $region123: #{tpu_custom_call.1} parent=103 // pred_region
          %715 = dma.done [#allocation9], 128
        $region124: #{tpu_custom_call.1} parent=103 // pred_fallthru
          _
        %s716 = smul.u32 8, %s40
        %p717 = scmp.lt.s32.totalorder %s716, 31
        %s718 = scalar_select %p717, %s716, 31
        %s719 = smul.addr %s718, 4
        %s720 = scalar_lea.vmem %s0, %s719
        %p721 = pneg %p61
        %p722 = pneg %p58
        %s723 = smul.u32 8, %s40
        %p724 = scmp.lt.s32.totalorder %s723, 31
        %s725 = scalar_select %p724, %s723, 31
        %s726 = smul.addr %s725, 4
        %s727 = scalar_lea.vmem %s1, %s726
        %p728 = pneg %p87
        %p729 = pneg %p84
        %s730 = smul.u32 8, %s40
        %p731 = scmp.lt.s32.totalorder %s730, 31
        %s732 = scalar_select %p731, %s730, 31
        %s733 = smul.addr %s732, 8
        %s734 = scalar_lea.vmem %s2, %s733
        %p735 = pneg %p113
        %p736 = pneg %p110
        %p737 = pneg %p134
        %p738 = pneg %p131
        %p739 = pneg %p155
        %p740 = pneg %p152
        %p741 = pneg %p176
        %p742 = pneg %p173
        %p743 = pneg %p197
        %p744 = pneg %p194
        %p745 = pneg %p218
        %p746 = pneg %p215
        %p747 = pneg %p239
        %p748 = pneg %p236
        %p749 = pneg %p260
        %p750 = pneg %p257
        %p751 = pneg %p281
        %p752 = pneg %p278
        %p753 = pneg %p302
        %p754 = pneg %p299
        %p755 = pneg %p323
        %p756 = pneg %p320
        %p757 = pneg %p344
        %p758 = pneg %p341
        %p759 = pneg %p365
        %p760 = pneg %p362
        %p761 = pneg %p386
        %p762 = pneg %p383
        %p763 = pneg %p407
        %p764 = pneg %p404
        %p765 = pneg %p428
        %p766 = pneg %p425
        %p767 = pneg %p449
        %p768 = pneg %p446
        %p769 = pneg %p470
        %p770 = pneg %p467
        %p771 = pneg %p491
        %p772 = pneg %p488
        %p773 = pneg %p517
        %p774 = pneg %p514
        %s775 = sand.u32 %s504, 1
        %s776 = scalar_lea.sflag [#allocation4], %s775
        %s777 = sand.u32 %s504, 1
        %s778 = smul.addr %s777, 64
        %s779 = scalar_lea.vmem [#allocation11], %s778
        %p780 = pneg %p543
        %p781 = pneg %p540
        %s782 = smul.u32 8, %s40
        %p783 = scmp.lt.s32.totalorder %s782, 31
        %s784 = scalar_select %p783, %s782, 31
        %s785 = smul.addr %s784, 8
        %s786 = scalar_lea.vmem %s22, %s785
        %s787 = smul.u32 8, %s40
        %p788 = scmp.lt.s32.totalorder %s787, 31
        %s789 = scalar_select %p788, %s787, 31
        %s790 = smul.addr %s789, 4
        %s791 = scalar_lea.vmem %s0, %s790
        %s792 = smul.u32 8, %s40
        %s793 = smul.u32 8, %s40
        %p794 = scmp.lt.s32.totalorder %s793, 31
        %s795 = scalar_select %p794, %s793, 31
        %s796 = smul.addr %s795, 4
        %s797 = scalar_lea.vmem %s1, %s796
        %s798 = smul.u32 8, %s40
        %s799 = smul.u32 8, %s40
        %p800 = scmp.lt.s32.totalorder %s799, 31
        %s801 = scalar_select %p800, %s799, 31
        %s802 = smul.addr %s801, 8
        %s803 = scalar_lea.vmem %s2, %s802
        %s804 = smul.u32 8, %s40
        %s805 = smul.u32 8, %s40
        %s806 = smul.u32 8, %s40
        %p807 = scmp.lt.s32.totalorder %s806, 31
        %s808 = scalar_select %p807, %s806, 31
        %s809 = smul.addr %s808, 8
        %s810 = scalar_lea.vmem %s22, %s809
        %s811 = smul.u32 8, %s40
        %v813 = vld [vmem:[%s791] sm:$0xf]
        %v814 = vld [vmem:[%s791 + $0x4] sm:$0xf]
        %v815 = vld [vmem:[%s791 + $0x8] sm:$0xf]
        %v816 = vld [vmem:[%s791 + $0xc] sm:$0xf]
        %v817 = vld [vmem:[%s791 + $0x10] sm:$0xf]
        %v818 = vld [vmem:[%s791 + $0x14] sm:$0xf]
        %v819 = vld [vmem:[%s791 + $0x18] sm:$0xf]
        %v820 = vld [vmem:[%s791 + $0x1c] sm:$0xf]
        %v821 = vld [vmem:[%s3] sm:$0xf]
        %v822 = vld [vmem:[%s3 + $0x4] sm:$0xf]
        %v823 = vld [vmem:[%s3 + $0x8] sm:$0xf]
        %v824 = vld [vmem:[%s3 + $0xc] sm:$0xf]
        %v825 = vld [vmem:[%s3 + $0x10] sm:$0xf]
        %v826 = vld [vmem:[%s3 + $0x14] sm:$0xf]
        %v827 = vld [vmem:[%s3 + $0x18] sm:$0xf]
        %v828 = vld [vmem:[%s3 + $0x1c] sm:$0xf]
        %v829 = vld [vmem:[%s3 + $0x20] sm:$0xf]
        %v830 = vld [vmem:[%s3 + $0x24] sm:$0xf]
        %v831 = vld [vmem:[%s3 + $0x28] sm:$0xf]
        %v832 = vld [vmem:[%s3 + $0x2c] sm:$0xf]
        %v833 = vld [vmem:[%s3 + $0x30] sm:$0xf]
        %v834 = vld [vmem:[%s3 + $0x34] sm:$0xf]
        %v835 = vld [vmem:[%s3 + $0x38] sm:$0xf]
        %v836 = vld [vmem:[%s3 + $0x3c] sm:$0xf]
        %v837 = vld [vmem:[%s797] sm:$0xf]
        %v838 = vld [vmem:[%s797 + $0x4] sm:$0xf]
        %v839 = vld [vmem:[%s797 + $0x8] sm:$0xf]
        %v840 = vld [vmem:[%s797 + $0xc] sm:$0xf]
        %v841 = vld [vmem:[%s797 + $0x10] sm:$0xf]
        %v842 = vld [vmem:[%s797 + $0x14] sm:$0xf]
        %v843 = vld [vmem:[%s797 + $0x18] sm:$0xf]
        %v844 = vld [vmem:[%s797 + $0x1c] sm:$0xf]
        %v845 = vld [vmem:[#allocation2] sm:$0xf]
        %v846 = vld [vmem:[#allocation2 + $0x4] sm:$0xf]
        %v855 = vunpack.c.l.b16 %v837
        %v856 = vunpack.c.l.b16 %v838
        %v857 = vunpack.c.l.b16 %v839
        %v858 = vunpack.c.l.b16 %v840
        %v859 = vunpack.c.l.b16 %v841
        %v860 = vunpack.c.l.b16 %v842
        %v861 = vunpack.c.l.b16 %v843
        %v862 = vunpack.c.l.b16 %v844
        %v863 = vpack.c.b16 %v856, %v855
        %v864 = vpack.c.b16 %v858, %v857
        %v865 = vpack.c.b16 %v860, %v859
        %v866 = vpack.c.b16 %v862, %v861
        %v869 = vunpack.c.l.b16 %v845
        %v870 = vunpack.c.l.b16 %v846
        %v871 = vpack.c.b16 %v870, %v869
        %vm873 = vcmask 130048
        %v875 = vsel %vm873, %v863, 0
        %v878 = vsel %vm873, %v864, 0
        %v881 = vsel %vm873, %v865, 0
        %v884 = vsel %vm873, %v866, 0
        %886 = vmatprep.subr.bf16.mxu0 0
        %887 = vmatpush1.bf16.msra.mxu0 0
        %888 = vmatprep.subr.bf16.mxu0 0
        %889 = vmatpush1.bf16.msra.mxu0 0
        %890 = vmatprep.subr.bf16.mxu0 0
        %891 = vmatpush1.bf16.msra.mxu0 0
        %892 = vmatprep.subr.bf16.mxu0 0
        %893 = vmatpush1.bf16.msra.mxu0 0
        %894 = vmatprep.subr.bf16.mxu0 0
        %895 = vmatpush1.bf16.msra.mxu0 0
        %896 = vmatprep.subr.bf16.mxu0 0
        %897 = vmatpush1.bf16.msra.mxu0 0
        %898 = vmatprep.subr.bf16.mxu0 0
        %899 = vmatpush1.bf16.msra.mxu0 0
        %900 = vmatprep.subr.bf16.mxu0 0
        %901 = vmatpush1.bf16.msra.mxu0 %v871
        %902 = vmatprep.subr.bf16.mxu0 0
        %903 = vmatpush2.bf16.msra.mxu0 0
        %904 = vmatprep.subr.bf16.mxu0 0
        %905 = vmatpush2.bf16.msra.mxu0 0
        %906 = vmatprep.subr.bf16.mxu0 0
        %907 = vmatpush2.bf16.msra.mxu0 0
        %908 = vmatprep.subr.bf16.mxu0 0
        %909 = vmatpush2.bf16.msra.mxu0 0
        %910 = vmatprep.subr.bf16.mxu0 0
        %911 = vmatpush2.bf16.msra.mxu0 0
        %912 = vmatprep.subr.bf16.mxu0 0
        %913 = vmatpush2.bf16.msra.mxu0 0
        %914 = vmatprep.subr.bf16.mxu0 0
        %915 = vmatpush2.bf16.msra.mxu0 0
        %916 = vmatprep.subr.bf16.mxu0 0
        %917 = vmatpush2.bf16.msra.mxu0 0
        %918 = vmatprep.mubr.bf16.mxu0 0
        %919 = vmatmul.mubr.bf16.gmra.mxu0 %v875
        %v920 = vpop.f32.mrf.mxu0
        %v921 = vadd.f32 0.0, %v920
        %v922 = vpop.f32.mrf.mxu0
        %v923 = vpop.f32.mrf.mxu0
        %v924 = vadd.f32 0.0, %v923
        %v925 = vpop.f32.mrf.mxu0
        %926 = vmatprep.mubr.bf16.mxu0 0
        %927 = vmatmul.mubr.bf16.gmra.mxu0 %v878
        %v928 = vpop.f32.mrf.mxu0
        %v929 = vadd.f32 0.0, %v928
        %v930 = vpop.f32.mrf.mxu0
        %v931 = vpop.f32.mrf.mxu0
        %v932 = vadd.f32 0.0, %v931
        %v933 = vpop.f32.mrf.mxu0
        %934 = vmatprep.mubr.bf16.mxu0 0
        %935 = vmatmul.mubr.bf16.gmra.mxu0 %v881
        %v936 = vpop.f32.mrf.mxu0
        %v937 = vadd.f32 0.0, %v936
        %v938 = vpop.f32.mrf.mxu0
        %v939 = vpop.f32.mrf.mxu0
        %v940 = vadd.f32 0.0, %v939
        %v941 = vpop.f32.mrf.mxu0
        %942 = vmatprep.mubr.bf16.mxu0 0
        %943 = vmatmul.mubr.bf16.gmra.mxu0 %v884
        %v944 = vpop.f32.mrf.mxu0
        %v945 = vadd.f32 0.0, %v944
        %v946 = vpop.f32.mrf.mxu0
        %v947 = vpop.f32.mrf.mxu0
        %v948 = vadd.f32 0.0, %v947
        %v949 = vpop.f32.mrf.mxu0
        %950 = vdwg.mxu0
        %v959 = vunpack.c.l.b16 %v813
        %v960 = vunpack.c.l.b16 %v814
        %v961 = vunpack.c.l.b16 %v815
        %v962 = vunpack.c.l.b16 %v816
        %v963 = vunpack.c.l.b16 %v817
        %v964 = vunpack.c.l.b16 %v818
        %v965 = vunpack.c.l.b16 %v819
        %v966 = vunpack.c.l.b16 %v820
        %v967 = vpack.c.b16 %v960, %v959
        %v968 = vpack.c.b16 %v962, %v961
        %v969 = vpack.c.b16 %v964, %v963
        %v970 = vpack.c.b16 %v966, %v965
        %v991 = vunpack.c.l.b16 %v821
        %v992 = vunpack.c.l.b16 %v822
        %v993 = vunpack.c.l.b16 %v823
        %v994 = vunpack.c.l.b16 %v824
        %v995 = vunpack.c.l.b16 %v825
        %v996 = vunpack.c.l.b16 %v826
        %v997 = vunpack.c.l.b16 %v827
        %v998 = vunpack.c.l.b16 %v828
        %v999 = vunpack.c.l.b16 %v829
        %v1000 = vunpack.c.l.b16 %v830
        %v1001 = vunpack.c.l.b16 %v831
        %v1002 = vunpack.c.l.b16 %v832
        %v1003 = vunpack.c.l.b16 %v833
        %v1004 = vunpack.c.l.b16 %v834
        %v1005 = vunpack.c.l.b16 %v835
        %v1006 = vunpack.c.l.b16 %v836
        %v1007 = vpack.c.b16 %v992, %v991
        %v1008 = vpack.c.b16 %v994, %v993
        %v1009 = vpack.c.b16 %v996, %v995
        %v1010 = vpack.c.b16 %v998, %v997
        %v1011 = vpack.c.b16 %v1000, %v999
        %v1012 = vpack.c.b16 %v1002, %v1001
        %v1013 = vpack.c.b16 %v1004, %v1003
        %v1014 = vpack.c.b16 %v1006, %v1005
        %1023 = vmatprep.subr.bf16.mxu0 0
        %1024 = vmatpush1.bf16.msra.mxu0 %v1014
        %1025 = vmatprep.subr.bf16.mxu0 0
        %1026 = vmatpush1.bf16.msra.mxu0 %v1013
        %1027 = vmatprep.subr.bf16.mxu0 0
        %1028 = vmatpush1.bf16.msra.mxu0 %v1012
        %1029 = vmatprep.subr.bf16.mxu0 0
        %1030 = vmatpush1.bf16.msra.mxu0 %v1011
        %1031 = vmatprep.subr.bf16.mxu0 0
        %1032 = vmatpush1.bf16.msra.mxu0 %v1010
        %1033 = vmatprep.subr.bf16.mxu0 0
        %1034 = vmatpush1.bf16.msra.mxu0 %v1009
        %1035 = vmatprep.subr.bf16.mxu0 0
        %1036 = vmatpush1.bf16.msra.mxu0 %v1008
        %1037 = vmatprep.subr.bf16.mxu0 0
        %1038 = vmatpush1.bf16.msra.mxu0 %v1007
        %1039 = vmatprep.subr.bf16.mxu0 0
        %1040 = vmatpush2.bf16.msra.mxu0 0
        %1041 = vmatprep.subr.bf16.mxu0 0
        %1042 = vmatpush2.bf16.msra.mxu0 0
        %1043 = vmatprep.subr.bf16.mxu0 0
        %1044 = vmatpush2.bf16.msra.mxu0 0
        %1045 = vmatprep.subr.bf16.mxu0 0
        %1046 = vmatpush2.bf16.msra.mxu0 0
        %1047 = vmatprep.subr.bf16.mxu0 0
        %1048 = vmatpush2.bf16.msra.mxu0 0
        %1049 = vmatprep.subr.bf16.mxu0 0
        %1050 = vmatpush2.bf16.msra.mxu0 0
        %1051 = vmatprep.subr.bf16.mxu0 0
        %1052 = vmatpush2.bf16.msra.mxu0 0
        %1053 = vmatprep.subr.bf16.mxu0 0
        %1054 = vmatpush2.bf16.msra.mxu0 0
        %1055 = vmatprep.mubr.bf16.mxu0 0
        %1056 = vmatmul.mubr.bf16.gmra.mxu0 %v967
        %v1057 = vpop.f32.mrf.mxu0
        %v1058 = vadd.f32 %v921, %v1057
        %v1059 = vpop.f32.mrf.mxu0
        %v1060 = vpop.f32.mrf.mxu0
        %v1061 = vadd.f32 %v924, %v1060
        %v1062 = vpop.f32.mrf.mxu0
        %1063 = vmatprep.mubr.bf16.mxu0 0
        %1064 = vmatmul.mubr.bf16.gmra.mxu0 %v968
        %v1065 = vpop.f32.mrf.mxu0
        %v1066 = vadd.f32 %v929, %v1065
        %v1067 = vpop.f32.mrf.mxu0
        %v1068 = vpop.f32.mrf.mxu0
        %v1069 = vadd.f32 %v932, %v1068
        %v1070 = vpop.f32.mrf.mxu0
        %1071 = vmatprep.mubr.bf16.mxu0 0
        %1072 = vmatmul.mubr.bf16.gmra.mxu0 %v969
        %v1073 = vpop.f32.mrf.mxu0
        %v1074 = vadd.f32 %v937, %v1073
        %v1075 = vpop.f32.mrf.mxu0
        %v1076 = vpop.f32.mrf.mxu0
        %v1077 = vadd.f32 %v940, %v1076
        %v1078 = vpop.f32.mrf.mxu0
        %1079 = vmatprep.mubr.bf16.mxu0 0
        %1080 = vmatmul.mubr.bf16.gmra.mxu0 %v970
        %v1081 = vpop.f32.mrf.mxu0
        %v1082 = vadd.f32 %v945, %v1081
        %v1083 = vpop.f32.mrf.mxu0
        %v1084 = vpop.f32.mrf.mxu0
        %v1085 = vadd.f32 %v948, %v1084
        %v1086 = vpop.f32.mrf.mxu0
        %1087 = vdwg.mxu0
        %v1088 = vld [vmem:[%s5] sm:$0x1]
        %v1090 = vlaneseq
        %v1091 = vshrl.u32 %v1090, 7
        %v1092 = vsub.s32 0, %v1091
        %v1093 = vrot.slane %v1088, %v1092
        %v1095 = vadd.f32 %v1058, %v1093
        %v1096 = vadd.f32 %v1061, %v1093
        %v1097 = vadd.f32 %v1066, %v1093
        %v1098 = vadd.f32 %v1069, %v1093
        %v1099 = vadd.f32 %v1074, %v1093
        %v1100 = vadd.f32 %v1077, %v1093
        %v1101 = vadd.f32 %v1082, %v1093
        %v1102 = vadd.f32 %v1085, %v1093
        %v1103 = vmax.f32 %v1095, 0.0
        %v1104 = vmax.f32 %v1096, 0.0
        %v1105 = vmax.f32 %v1097, 0.0
        %v1106 = vmax.f32 %v1098, 0.0
        %v1107 = vmax.f32 %v1099, 0.0
        %v1108 = vmax.f32 %v1100, 0.0
        %v1109 = vmax.f32 %v1101, 0.0
        %v1110 = vmax.f32 %v1102, 0.0
        %v1111 = vpack.c.bf16 %v1104, %v1103
        %v1112 = vpack.c.bf16 %v1106, %v1105
        %v1113 = vpack.c.bf16 %v1108, %v1107
        %v1114 = vpack.c.bf16 %v1110, %v1109
        %v1115 = vld [vmem:[%s6] sm:$0xf]
        %v1116 = vld [vmem:[%s6 + $0x4] sm:$0xf]
        %v1117 = vld [vmem:[%s6 + $0x8] sm:$0xf]
        %v1118 = vld [vmem:[%s6 + $0xc] sm:$0xf]
        %v1119 = vld [vmem:[%s6 + $0x10] sm:$0xf]
        %v1120 = vld [vmem:[%s6 + $0x14] sm:$0xf]
        %v1121 = vld [vmem:[%s6 + $0x18] sm:$0xf]
        %v1122 = vld [vmem:[%s6 + $0x1c] sm:$0xf]
        %v1123 = vld [vmem:[%s6 + $0x20] sm:$0xf]
        %v1124 = vld [vmem:[%s6 + $0x24] sm:$0xf]
        %v1125 = vld [vmem:[%s6 + $0x28] sm:$0xf]
        %v1126 = vld [vmem:[%s6 + $0x2c] sm:$0xf]
        %v1127 = vld [vmem:[%s6 + $0x30] sm:$0xf]
        %v1128 = vld [vmem:[%s6 + $0x34] sm:$0xf]
        %v1129 = vld [vmem:[%s6 + $0x38] sm:$0xf]
        %v1130 = vld [vmem:[%s6 + $0x3c] sm:$0xf]
        %v1131 = vld [vmem:[%s7] sm:$0x1]
        %v1133 = vlaneseq
        %v1134 = vshrl.u32 %v1133, 7
        %v1135 = vsub.s32 0, %v1134
        %v1136 = vrot.slane %v1131, %v1135
        %v1154 = vunpack.c.l.b16 %v1115
        %v1155 = vunpack.c.l.b16 %v1116
        %v1156 = vunpack.c.l.b16 %v1117
        %v1157 = vunpack.c.l.b16 %v1118
        %v1158 = vunpack.c.l.b16 %v1119
        %v1159 = vunpack.c.l.b16 %v1120
        %v1160 = vunpack.c.l.b16 %v1121
        %v1161 = vunpack.c.l.b16 %v1122
        %v1162 = vunpack.c.l.b16 %v1123
        %v1163 = vunpack.c.l.b16 %v1124
        %v1164 = vunpack.c.l.b16 %v1125
        %v1165 = vunpack.c.l.b16 %v1126
        %v1166 = vunpack.c.l.b16 %v1127
        %v1167 = vunpack.c.l.b16 %v1128
        %v1168 = vunpack.c.l.b16 %v1129
        %v1169 = vunpack.c.l.b16 %v1130
        %v1170 = vpack.c.b16 %v1155, %v1154
        %v1171 = vpack.c.b16 %v1157, %v1156
        %v1172 = vpack.c.b16 %v1159, %v1158
        %v1173 = vpack.c.b16 %v1161, %v1160
        %v1174 = vpack.c.b16 %v1163, %v1162
        %v1175 = vpack.c.b16 %v1165, %v1164
        %v1176 = vpack.c.b16 %v1167, %v1166
        %v1177 = vpack.c.b16 %v1169, %v1168
        %1186 = vmatprep.subr.bf16.mxu0 0
        %1187 = vmatpush1.bf16.msra.mxu0 %v1177
        %1188 = vmatprep.subr.bf16.mxu0 0
        %1189 = vmatpush1.bf16.msra.mxu0 %v1176
        %1190 = vmatprep.subr.bf16.mxu0 0
        %1191 = vmatpush1.bf16.msra.mxu0 %v1175
        %1192 = vmatprep.subr.bf16.mxu0 0
        %1193 = vmatpush1.bf16.msra.mxu0 %v1174
        %1194 = vmatprep.subr.bf16.mxu0 0
        %1195 = vmatpush1.bf16.msra.mxu0 %v1173
        %1196 = vmatprep.subr.bf16.mxu0 0
        %1197 = vmatpush1.bf16.msra.mxu0 %v1172
        %1198 = vmatprep.subr.bf16.mxu0 0
        %1199 = vmatpush1.bf16.msra.mxu0 %v1171
        %1200 = vmatprep.subr.bf16.mxu0 0
        %1201 = vmatpush1.bf16.msra.mxu0 %v1170
        %1202 = vmatprep.subr.bf16.mxu0 0
        %1203 = vmatpush2.bf16.msra.mxu0 0
        %1204 = vmatprep.subr.bf16.mxu0 0
        %1205 = vmatpush2.bf16.msra.mxu0 0
        %1206 = vmatprep.subr.bf16.mxu0 0
        %1207 = vmatpush2.bf16.msra.mxu0 0
        %1208 = vmatprep.subr.bf16.mxu0 0
        %1209 = vmatpush2.bf16.msra.mxu0 0
        %1210 = vmatprep.subr.bf16.mxu0 0
        %1211 = vmatpush2.bf16.msra.mxu0 0
        %1212 = vmatprep.subr.bf16.mxu0 0
        %1213 = vmatpush2.bf16.msra.mxu0 0
        %1214 = vmatprep.subr.bf16.mxu0 0
        %1215 = vmatpush2.bf16.msra.mxu0 0
        %1216 = vmatprep.subr.bf16.mxu0 0
        %1217 = vmatpush2.bf16.msra.mxu0 0
        %1218 = vmatprep.mubr.bf16.mxu0 0
        %1219 = vmatmul.mubr.bf16.gmra.mxu0 %v1111
        %v1220 = vpop.f32.mrf.mxu0
        %v1221 = vadd.f32 %v1136, %v1220
        %v1222 = vpop.f32.mrf.mxu0
        %v1223 = vpop.f32.mrf.mxu0
        %v1224 = vadd.f32 %v1136, %v1223
        %v1225 = vpop.f32.mrf.mxu0
        %1226 = vmatprep.mubr.bf16.mxu0 0
        %1227 = vmatmul.mubr.bf16.gmra.mxu0 %v1112
        %v1228 = vpop.f32.mrf.mxu0
        %v1229 = vadd.f32 %v1136, %v1228
        %v1230 = vpop.f32.mrf.mxu0
        %v1231 = vpop.f32.mrf.mxu0
        %v1232 = vadd.f32 %v1136, %v1231
        %v1233 = vpop.f32.mrf.mxu0
        %1234 = vmatprep.mubr.bf16.mxu0 0
        %1235 = vmatmul.mubr.bf16.gmra.mxu0 %v1113
        %v1236 = vpop.f32.mrf.mxu0
        %v1237 = vadd.f32 %v1136, %v1236
        %v1238 = vpop.f32.mrf.mxu0
        %v1239 = vpop.f32.mrf.mxu0
        %v1240 = vadd.f32 %v1136, %v1239
        %v1241 = vpop.f32.mrf.mxu0
        %1242 = vmatprep.mubr.bf16.mxu0 0
        %1243 = vmatmul.mubr.bf16.gmra.mxu0 %v1114
        %v1244 = vpop.f32.mrf.mxu0
        %v1245 = vadd.f32 %v1136, %v1244
        %v1246 = vpop.f32.mrf.mxu0
        %v1247 = vpop.f32.mrf.mxu0
        %v1248 = vadd.f32 %v1136, %v1247
        %v1249 = vpop.f32.mrf.mxu0
        %1250 = vdwg.mxu0
        %v1251 = vmax.f32 %v1221, 0.0
        %v1252 = vmax.f32 %v1224, 0.0
        %v1253 = vmax.f32 %v1229, 0.0
        %v1254 = vmax.f32 %v1232, 0.0
        %v1255 = vmax.f32 %v1237, 0.0
        %v1256 = vmax.f32 %v1240, 0.0
        %v1257 = vmax.f32 %v1245, 0.0
        %v1258 = vmax.f32 %v1248, 0.0
        %v1259 = vpack.c.bf16 %v1252, %v1251
        %v1260 = vpack.c.bf16 %v1254, %v1253
        %v1261 = vpack.c.bf16 %v1256, %v1255
        %v1262 = vpack.c.bf16 %v1258, %v1257
        %v1263 = vld [vmem:[%s8] sm:$0xf]
        %v1264 = vld [vmem:[%s8 + $0x4] sm:$0xf]
        %v1265 = vld [vmem:[%s8 + $0x8] sm:$0xf]
        %v1266 = vld [vmem:[%s8 + $0xc] sm:$0xf]
        %v1267 = vld [vmem:[%s8 + $0x10] sm:$0xf]
        %v1268 = vld [vmem:[%s8 + $0x14] sm:$0xf]
        %v1269 = vld [vmem:[%s8 + $0x18] sm:$0xf]
        %v1270 = vld [vmem:[%s8 + $0x1c] sm:$0xf]
        %v1271 = vld [vmem:[%s8 + $0x20] sm:$0xf]
        %v1272 = vld [vmem:[%s8 + $0x24] sm:$0xf]
        %v1273 = vld [vmem:[%s8 + $0x28] sm:$0xf]
        %v1274 = vld [vmem:[%s8 + $0x2c] sm:$0xf]
        %v1275 = vld [vmem:[%s8 + $0x30] sm:$0xf]
        %v1276 = vld [vmem:[%s8 + $0x34] sm:$0xf]
        %v1277 = vld [vmem:[%s8 + $0x38] sm:$0xf]
        %v1278 = vld [vmem:[%s8 + $0x3c] sm:$0xf]
        %v1279 = vld [vmem:[#allocation5] sm:$0x1]
        %v1281 = vlaneseq
        %v1282 = vshrl.u32 %v1281, 7
        %v1283 = vsub.s32 0, %v1282
        %v1284 = vrot.slane %v1279, %v1283
        %v1302 = vunpack.c.l.b16 %v1263
        %v1303 = vunpack.c.l.b16 %v1264
        %v1304 = vunpack.c.l.b16 %v1265
        %v1305 = vunpack.c.l.b16 %v1266
        %v1306 = vunpack.c.l.b16 %v1267
        %v1307 = vunpack.c.l.b16 %v1268
        %v1308 = vunpack.c.l.b16 %v1269
        %v1309 = vunpack.c.l.b16 %v1270
        %v1310 = vunpack.c.l.b16 %v1271
        %v1311 = vunpack.c.l.b16 %v1272
        %v1312 = vunpack.c.l.b16 %v1273
        %v1313 = vunpack.c.l.b16 %v1274
        %v1314 = vunpack.c.l.b16 %v1275
        %v1315 = vunpack.c.l.b16 %v1276
        %v1316 = vunpack.c.l.b16 %v1277
        %v1317 = vunpack.c.l.b16 %v1278
        %v1318 = vpack.c.b16 %v1303, %v1302
        %v1319 = vpack.c.b16 %v1305, %v1304
        %v1320 = vpack.c.b16 %v1307, %v1306
        %v1321 = vpack.c.b16 %v1309, %v1308
        %v1322 = vpack.c.b16 %v1311, %v1310
        %v1323 = vpack.c.b16 %v1313, %v1312
        %v1324 = vpack.c.b16 %v1315, %v1314
        %v1325 = vpack.c.b16 %v1317, %v1316
        %1334 = vmatprep.subr.bf16.mxu0 0
        %1335 = vmatpush1.bf16.msra.mxu0 %v1325
        %1336 = vmatprep.subr.bf16.mxu0 0
        %1337 = vmatpush1.bf16.msra.mxu0 %v1324
        %1338 = vmatprep.subr.bf16.mxu0 0
        %1339 = vmatpush1.bf16.msra.mxu0 %v1323
        %1340 = vmatprep.subr.bf16.mxu0 0
        %1341 = vmatpush1.bf16.msra.mxu0 %v1322
        %1342 = vmatprep.subr.bf16.mxu0 0
        %1343 = vmatpush1.bf16.msra.mxu0 %v1321
        %1344 = vmatprep.subr.bf16.mxu0 0
        %1345 = vmatpush1.bf16.msra.mxu0 %v1320
        %1346 = vmatprep.subr.bf16.mxu0 0
        %1347 = vmatpush1.bf16.msra.mxu0 %v1319
        %1348 = vmatprep.subr.bf16.mxu0 0
        %1349 = vmatpush1.bf16.msra.mxu0 %v1318
        %1350 = vmatprep.subr.bf16.mxu0 0
        %1351 = vmatpush2.bf16.msra.mxu0 0
        %1352 = vmatprep.subr.bf16.mxu0 0
        %1353 = vmatpush2.bf16.msra.mxu0 0
        %1354 = vmatprep.subr.bf16.mxu0 0
        %1355 = vmatpush2.bf16.msra.mxu0 0
        %1356 = vmatprep.subr.bf16.mxu0 0
        %1357 = vmatpush2.bf16.msra.mxu0 0
        %1358 = vmatprep.subr.bf16.mxu0 0
        %1359 = vmatpush2.bf16.msra.mxu0 0
        %1360 = vmatprep.subr.bf16.mxu0 0
        %1361 = vmatpush2.bf16.msra.mxu0 0
        %1362 = vmatprep.subr.bf16.mxu0 0
        %1363 = vmatpush2.bf16.msra.mxu0 0
        %1364 = vmatprep.subr.bf16.mxu0 0
        %1365 = vmatpush2.bf16.msra.mxu0 0
        %1366 = vmatprep.mubr.bf16.mxu0 0
        %1367 = vmatmul.mubr.bf16.gmra.mxu0 %v1259
        %v1368 = vpop.f32.mrf.mxu0
        %v1369 = vadd.f32 %v1284, %v1368
        %v1370 = vpop.f32.mrf.mxu0
        %v1371 = vpop.f32.mrf.mxu0
        %v1372 = vadd.f32 %v1284, %v1371
        %v1373 = vpop.f32.mrf.mxu0
        %1374 = vmatprep.mubr.bf16.mxu0 0
        %1375 = vmatmul.mubr.bf16.gmra.mxu0 %v1260
        %v1376 = vpop.f32.mrf.mxu0
        %v1377 = vadd.f32 %v1284, %v1376
        %v1378 = vpop.f32.mrf.mxu0
        %v1379 = vpop.f32.mrf.mxu0
        %v1380 = vadd.f32 %v1284, %v1379
        %v1381 = vpop.f32.mrf.mxu0
        %1382 = vmatprep.mubr.bf16.mxu0 0
        %1383 = vmatmul.mubr.bf16.gmra.mxu0 %v1261
        %v1384 = vpop.f32.mrf.mxu0
        %v1385 = vadd.f32 %v1284, %v1384
        %v1386 = vpop.f32.mrf.mxu0
        %v1387 = vpop.f32.mrf.mxu0
        %v1388 = vadd.f32 %v1284, %v1387
        %v1389 = vpop.f32.mrf.mxu0
        %1390 = vmatprep.mubr.bf16.mxu0 0
        %1391 = vmatmul.mubr.bf16.gmra.mxu0 %v1262
        %v1392 = vpop.f32.mrf.mxu0
        %v1393 = vadd.f32 %v1284, %v1392
        %v1394 = vpop.f32.mrf.mxu0
        %v1395 = vpop.f32.mrf.mxu0
        %v1396 = vadd.f32 %v1284, %v1395
        %v1397 = vpop.f32.mrf.mxu0
        %1398 = vdwg.mxu0
        %v1399 = vmax.f32 %v1369, 0.0
        %v1400 = vmax.f32 %v1372, 0.0
        %v1401 = vmax.f32 %v1377, 0.0
        %v1402 = vmax.f32 %v1380, 0.0
        %v1403 = vmax.f32 %v1385, 0.0
        %v1404 = vmax.f32 %v1388, 0.0
        %v1405 = vmax.f32 %v1393, 0.0
        %v1406 = vmax.f32 %v1396, 0.0
        %v1407 = vpack.c.bf16 %v1400, %v1399
        %v1408 = vpack.c.bf16 %v1402, %v1401
        %v1409 = vpack.c.bf16 %v1404, %v1403
        %v1410 = vpack.c.bf16 %v1406, %v1405
        %v1411 = vld [vmem:[%s10] sm:$0xf]
        %v1412 = vld [vmem:[%s10 + $0x4] sm:$0xf]
        %v1413 = vld [vmem:[%s10 + $0x8] sm:$0xf]
        %v1414 = vld [vmem:[%s10 + $0xc] sm:$0xf]
        %v1415 = vld [vmem:[%s10 + $0x10] sm:$0xf]
        %v1416 = vld [vmem:[%s10 + $0x14] sm:$0xf]
        %v1417 = vld [vmem:[%s10 + $0x18] sm:$0xf]
        %v1418 = vld [vmem:[%s10 + $0x1c] sm:$0xf]
        %v1419 = vld [vmem:[%s10 + $0x20] sm:$0xf]
        %v1420 = vld [vmem:[%s10 + $0x24] sm:$0xf]
        %v1421 = vld [vmem:[%s10 + $0x28] sm:$0xf]
        %v1422 = vld [vmem:[%s10 + $0x2c] sm:$0xf]
        %v1423 = vld [vmem:[%s10 + $0x30] sm:$0xf]
        %v1424 = vld [vmem:[%s10 + $0x34] sm:$0xf]
        %v1425 = vld [vmem:[%s10 + $0x38] sm:$0xf]
        %v1426 = vld [vmem:[%s10 + $0x3c] sm:$0xf]
        %v1427 = vld [vmem:[#allocation7] sm:$0x1]
        %v1429 = vlaneseq
        %v1430 = vshrl.u32 %v1429, 7
        %v1431 = vsub.s32 0, %v1430
        %v1432 = vrot.slane %v1427, %v1431
        %v1450 = vunpack.c.l.b16 %v1411
        %v1451 = vunpack.c.l.b16 %v1412
        %v1452 = vunpack.c.l.b16 %v1413
        %v1453 = vunpack.c.l.b16 %v1414
        %v1454 = vunpack.c.l.b16 %v1415
        %v1455 = vunpack.c.l.b16 %v1416
        %v1456 = vunpack.c.l.b16 %v1417
        %v1457 = vunpack.c.l.b16 %v1418
        %v1458 = vunpack.c.l.b16 %v1419
        %v1459 = vunpack.c.l.b16 %v1420
        %v1460 = vunpack.c.l.b16 %v1421
        %v1461 = vunpack.c.l.b16 %v1422
        %v1462 = vunpack.c.l.b16 %v1423
        %v1463 = vunpack.c.l.b16 %v1424
        %v1464 = vunpack.c.l.b16 %v1425
        %v1465 = vunpack.c.l.b16 %v1426
        %v1466 = vpack.c.b16 %v1451, %v1450
        %v1467 = vpack.c.b16 %v1453, %v1452
        %v1468 = vpack.c.b16 %v1455, %v1454
        %v1469 = vpack.c.b16 %v1457, %v1456
        %v1470 = vpack.c.b16 %v1459, %v1458
        %v1471 = vpack.c.b16 %v1461, %v1460
        %v1472 = vpack.c.b16 %v1463, %v1462
        %v1473 = vpack.c.b16 %v1465, %v1464
        %1482 = vmatprep.subr.bf16.mxu0 0
        %1483 = vmatpush1.bf16.msra.mxu0 %v1473
        %1484 = vmatprep.subr.bf16.mxu0 0
        %1485 = vmatpush1.bf16.msra.mxu0 %v1472
        %1486 = vmatprep.subr.bf16.mxu0 0
        %1487 = vmatpush1.bf16.msra.mxu0 %v1471
        %1488 = vmatprep.subr.bf16.mxu0 0
        %1489 = vmatpush1.bf16.msra.mxu0 %v1470
        %1490 = vmatprep.subr.bf16.mxu0 0
        %1491 = vmatpush1.bf16.msra.mxu0 %v1469
        %1492 = vmatprep.subr.bf16.mxu0 0
        %1493 = vmatpush1.bf16.msra.mxu0 %v1468
        %1494 = vmatprep.subr.bf16.mxu0 0
        %1495 = vmatpush1.bf16.msra.mxu0 %v1467
        %1496 = vmatprep.subr.bf16.mxu0 0
        %1497 = vmatpush1.bf16.msra.mxu0 %v1466
        %1498 = vmatprep.subr.bf16.mxu0 0
        %1499 = vmatpush2.bf16.msra.mxu0 0
        %1500 = vmatprep.subr.bf16.mxu0 0
        %1501 = vmatpush2.bf16.msra.mxu0 0
        %1502 = vmatprep.subr.bf16.mxu0 0
        %1503 = vmatpush2.bf16.msra.mxu0 0
        %1504 = vmatprep.subr.bf16.mxu0 0
        %1505 = vmatpush2.bf16.msra.mxu0 0
        %1506 = vmatprep.subr.bf16.mxu0 0
        %1507 = vmatpush2.bf16.msra.mxu0 0
        %1508 = vmatprep.subr.bf16.mxu0 0
        %1509 = vmatpush2.bf16.msra.mxu0 0
        %1510 = vmatprep.subr.bf16.mxu0 0
        %1511 = vmatpush2.bf16.msra.mxu0 0
        %1512 = vmatprep.subr.bf16.mxu0 0
        %1513 = vmatpush2.bf16.msra.mxu0 0
        %1514 = vmatprep.mubr.bf16.mxu0 0
        %1515 = vmatmul.mubr.bf16.gmra.mxu0 %v1407
        %v1516 = vpop.f32.mrf.mxu0
        %v1517 = vadd.f32 %v1432, %v1516
        %v1518 = vpop.f32.mrf.mxu0
        %v1519 = vpop.f32.mrf.mxu0
        %v1520 = vadd.f32 %v1432, %v1519
        %v1521 = vpop.f32.mrf.mxu0
        %1522 = vmatprep.mubr.bf16.mxu0 0
        %1523 = vmatmul.mubr.bf16.gmra.mxu0 %v1408
        %v1524 = vpop.f32.mrf.mxu0
        %v1525 = vadd.f32 %v1432, %v1524
        %v1526 = vpop.f32.mrf.mxu0
        %v1527 = vpop.f32.mrf.mxu0
        %v1528 = vadd.f32 %v1432, %v1527
        %v1529 = vpop.f32.mrf.mxu0
        %1530 = vmatprep.mubr.bf16.mxu0 0
        %1531 = vmatmul.mubr.bf16.gmra.mxu0 %v1409
        %v1532 = vpop.f32.mrf.mxu0
        %v1533 = vadd.f32 %v1432, %v1532
        %v1534 = vpop.f32.mrf.mxu0
        %v1535 = vpop.f32.mrf.mxu0
        %v1536 = vadd.f32 %v1432, %v1535
        %v1537 = vpop.f32.mrf.mxu0
        %1538 = vmatprep.mubr.bf16.mxu0 0
        %1539 = vmatmul.mubr.bf16.gmra.mxu0 %v1410
        %v1540 = vpop.f32.mrf.mxu0
        %v1541 = vadd.f32 %v1432, %v1540
        %v1542 = vpop.f32.mrf.mxu0
        %v1543 = vpop.f32.mrf.mxu0
        %v1544 = vadd.f32 %v1432, %v1543
        %v1545 = vpop.f32.mrf.mxu0
        %1546 = vdwg.mxu0
        %vm1547 = vcmask 261120
        %1548 = vst.msk [vmem:[%s810] sm:$0xff] %vm1547, %v1517
        %1549 = vst.msk [vmem:[%s810 + $0x8] sm:$0xff] %vm1547, %v1520
        %1550 = vst.msk [vmem:[%s810 + $0x10] sm:$0xff] %vm1547, %v1525
        %1551 = vst.msk [vmem:[%s810 + $0x18] sm:$0xff] %vm1547, %v1528
        %1552 = vst.msk [vmem:[%s810 + $0x20] sm:$0xff] %vm1547, %v1533
        %1553 = vst.msk [vmem:[%s810 + $0x28] sm:$0xff] %vm1547, %v1536
        %1554 = vst.msk [vmem:[%s810 + $0x30] sm:$0xff] %vm1547, %v1541
        %1555 = vst.msk [vmem:[%s810 + $0x38] sm:$0xff] %vm1547, %v1544
        %v1556 = vld [vmem:[%s803] sm:$0xff]
        %v1557 = vld [vmem:[%s803 + $0x8] sm:$0xff]
        %v1558 = vld [vmem:[%s803 + $0x10] sm:$0xff]
        %v1559 = vld [vmem:[%s803 + $0x18] sm:$0xff]
        %v1560 = vld [vmem:[%s803 + $0x20] sm:$0xff]
        %v1561 = vld [vmem:[%s803 + $0x28] sm:$0xff]
        %v1562 = vld [vmem:[%s803 + $0x30] sm:$0xff]
        %v1563 = vld [vmem:[%s803 + $0x38] sm:$0xff]
        %v1564 = vmul.f32 %v1517, 0.5
        %v1565 = vmul.f32 %v1520, 0.5
        %v1566 = vmul.f32 %v1525, 0.5
        %v1567 = vmul.f32 %v1528, 0.5
        %v1568 = vmul.f32 %v1533, 0.5
        %v1569 = vmul.f32 %v1536, 0.5
        %v1570 = vmul.f32 %v1541, 0.5
        %v1571 = vmul.f32 %v1544, 0.5
        %v1572 = vmul.f32 %v1564, 1.442695
        %v1573 = vpow.pop %v1572
        %v1574 = vmul.f32 %v1565, 1.442695
        %v1575 = vpow.pop %v1574
        %v1576 = vmul.f32 %v1566, 1.442695
        %v1577 = vpow.pop %v1576
        %v1578 = vmul.f32 %v1567, 1.442695
        %v1579 = vpow.pop %v1578
        %v1580 = vmul.f32 %v1568, 1.442695
        %v1581 = vpow.pop %v1580
        %v1582 = vmul.f32 %v1569, 1.442695
        %v1583 = vpow.pop %v1582
        %v1584 = vmul.f32 %v1570, 1.442695
        %v1585 = vpow.pop %v1584
        %v1586 = vmul.f32 %v1571, 1.442695
        %v1587 = vpow.pop %v1586
        %1596 = vrot.lane.b32.xlu0 %v1573, 112
        %v1597 = vpop.permute.xlu0 %1596
        %1598 = vrot.lane.b32.xlu0 %v1575, 112
        %v1599 = vpop.permute.xlu0 %1598
        %1600 = vrot.lane.b32.xlu0 %v1577, 112
        %v1601 = vpop.permute.xlu0 %1600
        %1602 = vrot.lane.b32.xlu0 %v1579, 112
        %v1603 = vpop.permute.xlu0 %1602
        %1604 = vrot.lane.b32.xlu0 %v1581, 112
        %v1605 = vpop.permute.xlu0 %1604
        %1606 = vrot.lane.b32.xlu0 %v1583, 112
        %v1607 = vpop.permute.xlu0 %1606
        %1608 = vrot.lane.b32.xlu0 %v1585, 112
        %v1609 = vpop.permute.xlu0 %1608
        %1610 = vrot.lane.b32.xlu0 %v1587, 112
        %v1611 = vpop.permute.xlu0 %1610
        %v1620 = vmul.f32 %v1556, %v1597
        %v1621 = vmul.f32 %v1557, %v1599
        %v1622 = vmul.f32 %v1558, %v1601
        %v1623 = vmul.f32 %v1559, %v1603
        %v1624 = vmul.f32 %v1560, %v1605
        %v1625 = vmul.f32 %v1561, %v1607
        %v1626 = vmul.f32 %v1562, %v1609
        %v1627 = vmul.f32 %v1563, %v1611
        %v1628 = vadd.f32 %v1517, %v1620
        %v1629 = vadd.f32 %v1520, %v1621
        %v1630 = vadd.f32 %v1525, %v1622
        %v1631 = vadd.f32 %v1528, %v1623
        %v1632 = vadd.f32 %v1533, %v1624
        %v1633 = vadd.f32 %v1536, %v1625
        %v1634 = vadd.f32 %v1541, %v1626
        %v1635 = vadd.f32 %v1544, %v1627
        %v1636 = vpack.c.bf16 %v1629, %v1628
        %v1637 = vpack.c.bf16 %v1631, %v1630
        %v1638 = vpack.c.bf16 %v1633, %v1632
        %v1639 = vpack.c.bf16 %v1635, %v1634
        %v1640 = vld [vmem:[#allocation8] sm:$0xf]
        %v1641 = vld [vmem:[#allocation8 + $0x4] sm:$0xf]
        %v1642 = vld [vmem:[%s797] sm:$0xf]
        %v1643 = vld [vmem:[%s797 + $0x4] sm:$0xf]
        %v1644 = vld [vmem:[%s797 + $0x8] sm:$0xf]
        %v1645 = vld [vmem:[%s797 + $0xc] sm:$0xf]
        %v1646 = vld [vmem:[%s797 + $0x10] sm:$0xf]
        %v1647 = vld [vmem:[%s797 + $0x14] sm:$0xf]
        %v1648 = vld [vmem:[%s797 + $0x18] sm:$0xf]
        %v1649 = vld [vmem:[%s797 + $0x1c] sm:$0xf]
        %v1650 = vld [vmem:[#allocation10] sm:$0xf]
        %v1651 = vld [vmem:[#allocation10 + $0x4] sm:$0xf]
        %v1660 = vunpack.c.l.b16 %v1642
        %v1661 = vunpack.c.l.b16 %v1643
        %v1662 = vunpack.c.l.b16 %v1644
        %v1663 = vunpack.c.l.b16 %v1645
        %v1664 = vunpack.c.l.b16 %v1646
        %v1665 = vunpack.c.l.b16 %v1647
        %v1666 = vunpack.c.l.b16 %v1648
        %v1667 = vunpack.c.l.b16 %v1649
        %v1668 = vpack.c.b16 %v1661, %v1660
        %v1669 = vpack.c.b16 %v1663, %v1662
        %v1670 = vpack.c.b16 %v1665, %v1664
        %v1671 = vpack.c.b16 %v1667, %v1666
        %v1674 = vunpack.c.l.b16 %v1650
        %v1675 = vunpack.c.l.b16 %v1651
        %v1676 = vpack.c.b16 %v1675, %v1674
        %v1679 = vsel %vm873, %v1668, 0
        %v1682 = vsel %vm873, %v1669, 0
        %v1685 = vsel %vm873, %v1670, 0
        %v1688 = vsel %vm873, %v1671, 0
        %1690 = vmatprep.subr.bf16.mxu0 0
        %1691 = vmatpush1.bf16.msra.mxu0 0
        %1692 = vmatprep.subr.bf16.mxu0 0
        %1693 = vmatpush1.bf16.msra.mxu0 0
        %1694 = vmatprep.subr.bf16.mxu0 0
        %1695 = vmatpush1.bf16.msra.mxu0 0
        %1696 = vmatprep.subr.bf16.mxu0 0
        %1697 = vmatpush1.bf16.msra.mxu0 0
        %1698 = vmatprep.subr.bf16.mxu0 0
        %1699 = vmatpush1.bf16.msra.mxu0 0
        %1700 = vmatprep.subr.bf16.mxu0 0
        %1701 = vmatpush1.bf16.msra.mxu0 0
        %1702 = vmatprep.subr.bf16.mxu0 0
        %1703 = vmatpush1.bf16.msra.mxu0 0
        %1704 = vmatprep.subr.bf16.mxu0 0
        %1705 = vmatpush1.bf16.msra.mxu0 %v1676
        %1706 = vmatprep.subr.bf16.mxu0 0
        %1707 = vmatpush2.bf16.msra.mxu0 0
        %1708 = vmatprep.subr.bf16.mxu0 0
        %1709 = vmatpush2.bf16.msra.mxu0 0
        %1710 = vmatprep.subr.bf16.mxu0 0
        %1711 = vmatpush2.bf16.msra.mxu0 0
        %1712 = vmatprep.subr.bf16.mxu0 0
        %1713 = vmatpush2.bf16.msra.mxu0 0
        %1714 = vmatprep.subr.bf16.mxu0 0
        %1715 = vmatpush2.bf16.msra.mxu0 0
        %1716 = vmatprep.subr.bf16.mxu0 0
        %1717 = vmatpush2.bf16.msra.mxu0 0
        %1718 = vmatprep.subr.bf16.mxu0 0
        %1719 = vmatpush2.bf16.msra.mxu0 0
        %1720 = vmatprep.subr.bf16.mxu0 0
        %1721 = vmatpush2.bf16.msra.mxu0 0
        %1722 = vmatprep.mubr.bf16.mxu0 0
        %1723 = vmatmul.mubr.bf16.gmra.mxu0 %v1679
        %v1724 = vpop.f32.mrf.mxu0
        %v1725 = vadd.f32 0.0, %v1724
        %v1726 = vpop.f32.mrf.mxu0
        %v1727 = vpop.f32.mrf.mxu0
        %v1728 = vadd.f32 0.0, %v1727
        %v1729 = vpop.f32.mrf.mxu0
        %1730 = vmatprep.mubr.bf16.mxu0 0
        %1731 = vmatmul.mubr.bf16.gmra.mxu0 %v1682
        %v1732 = vpop.f32.mrf.mxu0
        %v1733 = vadd.f32 0.0, %v1732
        %v1734 = vpop.f32.mrf.mxu0
        %v1735 = vpop.f32.mrf.mxu0
        %v1736 = vadd.f32 0.0, %v1735
        %v1737 = vpop.f32.mrf.mxu0
        %1738 = vmatprep.mubr.bf16.mxu0 0
        %1739 = vmatmul.mubr.bf16.gmra.mxu0 %v1685
        %v1740 = vpop.f32.mrf.mxu0
        %v1741 = vadd.f32 0.0, %v1740
        %v1742 = vpop.f32.mrf.mxu0
        %v1743 = vpop.f32.mrf.mxu0
        %v1744 = vadd.f32 0.0, %v1743
        %v1745 = vpop.f32.mrf.mxu0
        %1746 = vmatprep.mubr.bf16.mxu0 0
        %1747 = vmatmul.mubr.bf16.gmra.mxu0 %v1688
        %v1748 = vpop.f32.mrf.mxu0
        %v1749 = vadd.f32 0.0, %v1748
        %v1750 = vpop.f32.mrf.mxu0
        %v1751 = vpop.f32.mrf.mxu0
        %v1752 = vadd.f32 0.0, %v1751
        %v1753 = vpop.f32.mrf.mxu0
        %1754 = vdwg.mxu0
        %v1757 = vunpack.c.l.b16 %v1640
        %v1758 = vunpack.c.l.b16 %v1641
        %v1759 = vpack.c.b16 %v1758, %v1757
        %v1762 = vsel %vm873, %v1636, 0
        %v1765 = vsel %vm873, %v1637, 0
        %v1768 = vsel %vm873, %v1638, 0
        %v1771 = vsel %vm873, %v1639, 0
        %1773 = vmatprep.subr.bf16.mxu0 0
        %1774 = vmatpush1.bf16.msra.mxu0 0
        %1775 = vmatprep.subr.bf16.mxu0 0
        %1776 = vmatpush1.bf16.msra.mxu0 0
        %1777 = vmatprep.subr.bf16.mxu0 0
        %1778 = vmatpush1.bf16.msra.mxu0 0
        %1779 = vmatprep.subr.bf16.mxu0 0
        %1780 = vmatpush1.bf16.msra.mxu0 0
        %1781 = vmatprep.subr.bf16.mxu0 0
        %1782 = vmatpush1.bf16.msra.mxu0 0
        %1783 = vmatprep.subr.bf16.mxu0 0
        %1784 = vmatpush1.bf16.msra.mxu0 0
        %1785 = vmatprep.subr.bf16.mxu0 0
        %1786 = vmatpush1.bf16.msra.mxu0 0
        %1787 = vmatprep.subr.bf16.mxu0 0
        %1788 = vmatpush1.bf16.msra.mxu0 %v1759
        %1789 = vmatprep.subr.bf16.mxu0 0
        %1790 = vmatpush2.bf16.msra.mxu0 0
        %1791 = vmatprep.subr.bf16.mxu0 0
        %1792 = vmatpush2.bf16.msra.mxu0 0
        %1793 = vmatprep.subr.bf16.mxu0 0
        %1794 = vmatpush2.bf16.msra.mxu0 0
        %1795 = vmatprep.subr.bf16.mxu0 0
        %1796 = vmatpush2.bf16.msra.mxu0 0
        %1797 = vmatprep.subr.bf16.mxu0 0
        %1798 = vmatpush2.bf16.msra.mxu0 0
        %1799 = vmatprep.subr.bf16.mxu0 0
        %1800 = vmatpush2.bf16.msra.mxu0 0
        %1801 = vmatprep.subr.bf16.mxu0 0
        %1802 = vmatpush2.bf16.msra.mxu0 0
        %1803 = vmatprep.subr.bf16.mxu0 0
        %1804 = vmatpush2.bf16.msra.mxu0 0
        %1805 = vmatprep.mubr.bf16.mxu0 0
        %1806 = vmatmul.mubr.bf16.gmra.mxu0 %v1762
        %v1807 = vpop.f32.mrf.mxu0
        %v1808 = vadd.f32 %v1725, %v1807
        %v1809 = vpop.f32.mrf.mxu0
        %v1810 = vpop.f32.mrf.mxu0
        %v1811 = vadd.f32 %v1728, %v1810
        %v1812 = vpop.f32.mrf.mxu0
        %1813 = vmatprep.mubr.bf16.mxu0 0
        %1814 = vmatmul.mubr.bf16.gmra.mxu0 %v1765
        %v1815 = vpop.f32.mrf.mxu0
        %v1816 = vadd.f32 %v1733, %v1815
        %v1817 = vpop.f32.mrf.mxu0
        %v1818 = vpop.f32.mrf.mxu0
        %v1819 = vadd.f32 %v1736, %v1818
        %v1820 = vpop.f32.mrf.mxu0
        %1821 = vmatprep.mubr.bf16.mxu0 0
        %1822 = vmatmul.mubr.bf16.gmra.mxu0 %v1768
        %v1823 = vpop.f32.mrf.mxu0
        %v1824 = vadd.f32 %v1741, %v1823
        %v1825 = vpop.f32.mrf.mxu0
        %v1826 = vpop.f32.mrf.mxu0
        %v1827 = vadd.f32 %v1744, %v1826
        %v1828 = vpop.f32.mrf.mxu0
        %1829 = vmatprep.mubr.bf16.mxu0 0
        %1830 = vmatmul.mubr.bf16.gmra.mxu0 %v1771
        %v1831 = vpop.f32.mrf.mxu0
        %v1832 = vadd.f32 %v1749, %v1831
        %v1833 = vpop.f32.mrf.mxu0
        %v1834 = vpop.f32.mrf.mxu0
        %v1835 = vadd.f32 %v1752, %v1834
        %v1836 = vpop.f32.mrf.mxu0
        %1837 = vdwg.mxu0
        %v1838 = vld [vmem:[%s14] sm:$0x1]
        %v1840 = vlaneseq
        %v1841 = vshrl.u32 %v1840, 7
        %v1842 = vsub.s32 0, %v1841
        %v1843 = vrot.slane %v1838, %v1842
        %v1845 = vadd.f32 %v1808, %v1843
        %v1846 = vadd.f32 %v1811, %v1843
        %v1847 = vadd.f32 %v1816, %v1843
        %v1848 = vadd.f32 %v1819, %v1843
        %v1849 = vadd.f32 %v1824, %v1843
        %v1850 = vadd.f32 %v1827, %v1843
        %v1851 = vadd.f32 %v1832, %v1843
        %v1852 = vadd.f32 %v1835, %v1843
        %v1853 = vmax.f32 %v1845, 0.0
        %v1854 = vmax.f32 %v1846, 0.0
        %v1855 = vmax.f32 %v1847, 0.0
        %v1856 = vmax.f32 %v1848, 0.0
        %v1857 = vmax.f32 %v1849, 0.0
        %v1858 = vmax.f32 %v1850, 0.0
        %v1859 = vmax.f32 %v1851, 0.0
        %v1860 = vmax.f32 %v1852, 0.0
        %v1861 = vpack.c.bf16 %v1854, %v1853
        %v1862 = vpack.c.bf16 %v1856, %v1855
        %v1863 = vpack.c.bf16 %v1858, %v1857
        %v1864 = vpack.c.bf16 %v1860, %v1859
        %v1865 = vld [vmem:[%s15] sm:$0xf]
        %v1866 = vld [vmem:[%s15 + $0x4] sm:$0xf]
        %v1867 = vld [vmem:[%s15 + $0x8] sm:$0xf]
        %v1868 = vld [vmem:[%s15 + $0xc] sm:$0xf]
        %v1869 = vld [vmem:[%s15 + $0x10] sm:$0xf]
        %v1870 = vld [vmem:[%s15 + $0x14] sm:$0xf]
        %v1871 = vld [vmem:[%s15 + $0x18] sm:$0xf]
        %v1872 = vld [vmem:[%s15 + $0x1c] sm:$0xf]
        %v1873 = vld [vmem:[%s15 + $0x20] sm:$0xf]
        %v1874 = vld [vmem:[%s15 + $0x24] sm:$0xf]
        %v1875 = vld [vmem:[%s15 + $0x28] sm:$0xf]
        %v1876 = vld [vmem:[%s15 + $0x2c] sm:$0xf]
        %v1877 = vld [vmem:[%s15 + $0x30] sm:$0xf]
        %v1878 = vld [vmem:[%s15 + $0x34] sm:$0xf]
        %v1879 = vld [vmem:[%s15 + $0x38] sm:$0xf]
        %v1880 = vld [vmem:[%s15 + $0x3c] sm:$0xf]
        %v1881 = vld [vmem:[%s16] sm:$0x1]
        %v1883 = vlaneseq
        %v1884 = vshrl.u32 %v1883, 7
        %v1885 = vsub.s32 0, %v1884
        %v1886 = vrot.slane %v1881, %v1885
        %v1904 = vunpack.c.l.b16 %v1865
        %v1905 = vunpack.c.l.b16 %v1866
        %v1906 = vunpack.c.l.b16 %v1867
        %v1907 = vunpack.c.l.b16 %v1868
        %v1908 = vunpack.c.l.b16 %v1869
        %v1909 = vunpack.c.l.b16 %v1870
        %v1910 = vunpack.c.l.b16 %v1871
        %v1911 = vunpack.c.l.b16 %v1872
        %v1912 = vunpack.c.l.b16 %v1873
        %v1913 = vunpack.c.l.b16 %v1874
        %v1914 = vunpack.c.l.b16 %v1875
        %v1915 = vunpack.c.l.b16 %v1876
        %v1916 = vunpack.c.l.b16 %v1877
        %v1917 = vunpack.c.l.b16 %v1878
        %v1918 = vunpack.c.l.b16 %v1879
        %v1919 = vunpack.c.l.b16 %v1880
        %v1920 = vpack.c.b16 %v1905, %v1904
        %v1921 = vpack.c.b16 %v1907, %v1906
        %v1922 = vpack.c.b16 %v1909, %v1908
        %v1923 = vpack.c.b16 %v1911, %v1910
        %v1924 = vpack.c.b16 %v1913, %v1912
        %v1925 = vpack.c.b16 %v1915, %v1914
        %v1926 = vpack.c.b16 %v1917, %v1916
        %v1927 = vpack.c.b16 %v1919, %v1918
        %1936 = vmatprep.subr.bf16.mxu0 0
        %1937 = vmatpush1.bf16.msra.mxu0 %v1927
        %1938 = vmatprep.subr.bf16.mxu0 0
        %1939 = vmatpush1.bf16.msra.mxu0 %v1926
        %1940 = vmatprep.subr.bf16.mxu0 0
        %1941 = vmatpush1.bf16.msra.mxu0 %v1925
        %1942 = vmatprep.subr.bf16.mxu0 0
        %1943 = vmatpush1.bf16.msra.mxu0 %v1924
        %1944 = vmatprep.subr.bf16.mxu0 0
        %1945 = vmatpush1.bf16.msra.mxu0 %v1923
        %1946 = vmatprep.subr.bf16.mxu0 0
        %1947 = vmatpush1.bf16.msra.mxu0 %v1922
        %1948 = vmatprep.subr.bf16.mxu0 0
        %1949 = vmatpush1.bf16.msra.mxu0 %v1921
        %1950 = vmatprep.subr.bf16.mxu0 0
        %1951 = vmatpush1.bf16.msra.mxu0 %v1920
        %1952 = vmatprep.subr.bf16.mxu0 0
        %1953 = vmatpush2.bf16.msra.mxu0 0
        %1954 = vmatprep.subr.bf16.mxu0 0
        %1955 = vmatpush2.bf16.msra.mxu0 0
        %1956 = vmatprep.subr.bf16.mxu0 0
        %1957 = vmatpush2.bf16.msra.mxu0 0
        %1958 = vmatprep.subr.bf16.mxu0 0
        %1959 = vmatpush2.bf16.msra.mxu0 0
        %1960 = vmatprep.subr.bf16.mxu0 0
        %1961 = vmatpush2.bf16.msra.mxu0 0
        %1962 = vmatprep.subr.bf16.mxu0 0
        %1963 = vmatpush2.bf16.msra.mxu0 0
        %1964 = vmatprep.subr.bf16.mxu0 0
        %1965 = vmatpush2.bf16.msra.mxu0 0
        %1966 = vmatprep.subr.bf16.mxu0 0
        %1967 = vmatpush2.bf16.msra.mxu0 0
        %1968 = vmatprep.mubr.bf16.mxu0 0
        %1969 = vmatmul.mubr.bf16.gmra.mxu0 %v1861
        %v1970 = vpop.f32.mrf.mxu0
        %v1971 = vadd.f32 %v1886, %v1970
        %v1972 = vpop.f32.mrf.mxu0
        %v1973 = vpop.f32.mrf.mxu0
        %v1974 = vadd.f32 %v1886, %v1973
        %v1975 = vpop.f32.mrf.mxu0
        %1976 = vmatprep.mubr.bf16.mxu0 0
        %1977 = vmatmul.mubr.bf16.gmra.mxu0 %v1862
        %v1978 = vpop.f32.mrf.mxu0
        %v1979 = vadd.f32 %v1886, %v1978
        %v1980 = vpop.f32.mrf.mxu0
        %v1981 = vpop.f32.mrf.mxu0
        %v1982 = vadd.f32 %v1886, %v1981
        %v1983 = vpop.f32.mrf.mxu0
        %1984 = vmatprep.mubr.bf16.mxu0 0
        %1985 = vmatmul.mubr.bf16.gmra.mxu0 %v1863
        %v1986 = vpop.f32.mrf.mxu0
        %v1987 = vadd.f32 %v1886, %v1986
        %v1988 = vpop.f32.mrf.mxu0
        %v1989 = vpop.f32.mrf.mxu0
        %v1990 = vadd.f32 %v1886, %v1989
        %v1991 = vpop.f32.mrf.mxu0
        %1992 = vmatprep.mubr.bf16.mxu0 0
        %1993 = vmatmul.mubr.bf16.gmra.mxu0 %v1864
        %v1994 = vpop.f32.mrf.mxu0
        %v1995 = vadd.f32 %v1886, %v1994
        %v1996 = vpop.f32.mrf.mxu0
        %v1997 = vpop.f32.mrf.mxu0
        %v1998 = vadd.f32 %v1886, %v1997
        %v1999 = vpop.f32.mrf.mxu0
        %2000 = vdwg.mxu0
        %v2001 = vmax.f32 %v1971, 0.0
        %v2002 = vmax.f32 %v1974, 0.0
        %v2003 = vmax.f32 %v1979, 0.0
        %v2004 = vmax.f32 %v1982, 0.0
        %v2005 = vmax.f32 %v1987, 0.0
        %v2006 = vmax.f32 %v1990, 0.0
        %v2007 = vmax.f32 %v1995, 0.0
        %v2008 = vmax.f32 %v1998, 0.0
        %v2009 = vpack.c.bf16 %v2002, %v2001
        %v2010 = vpack.c.bf16 %v2004, %v2003
        %v2011 = vpack.c.bf16 %v2006, %v2005
        %v2012 = vpack.c.bf16 %v2008, %v2007
        %v2013 = vld [vmem:[%s17] sm:$0xf]
        %v2014 = vld [vmem:[%s17 + $0x4] sm:$0xf]
        %v2015 = vld [vmem:[%s17 + $0x8] sm:$0xf]
        %v2016 = vld [vmem:[%s17 + $0xc] sm:$0xf]
        %v2017 = vld [vmem:[%s17 + $0x10] sm:$0xf]
        %v2018 = vld [vmem:[%s17 + $0x14] sm:$0xf]
        %v2019 = vld [vmem:[%s17 + $0x18] sm:$0xf]
        %v2020 = vld [vmem:[%s17 + $0x1c] sm:$0xf]
        %v2021 = vld [vmem:[%s17 + $0x20] sm:$0xf]
        %v2022 = vld [vmem:[%s17 + $0x24] sm:$0xf]
        %v2023 = vld [vmem:[%s17 + $0x28] sm:$0xf]
        %v2024 = vld [vmem:[%s17 + $0x2c] sm:$0xf]
        %v2025 = vld [vmem:[%s17 + $0x30] sm:$0xf]
        %v2026 = vld [vmem:[%s17 + $0x34] sm:$0xf]
        %v2027 = vld [vmem:[%s17 + $0x38] sm:$0xf]
        %v2028 = vld [vmem:[%s17 + $0x3c] sm:$0xf]
        %v2029 = vld [vmem:[%s18] sm:$0x1]
        %v2031 = vlaneseq
        %v2032 = vshrl.u32 %v2031, 7
        %v2033 = vsub.s32 0, %v2032
        %v2034 = vrot.slane %v2029, %v2033
        %v2052 = vunpack.c.l.b16 %v2013
        %v2053 = vunpack.c.l.b16 %v2014
        %v2054 = vunpack.c.l.b16 %v2015
        %v2055 = vunpack.c.l.b16 %v2016
        %v2056 = vunpack.c.l.b16 %v2017
        %v2057 = vunpack.c.l.b16 %v2018
        %v2058 = vunpack.c.l.b16 %v2019
        %v2059 = vunpack.c.l.b16 %v2020
        %v2060 = vunpack.c.l.b16 %v2021
        %v2061 = vunpack.c.l.b16 %v2022
        %v2062 = vunpack.c.l.b16 %v2023
        %v2063 = vunpack.c.l.b16 %v2024
        %v2064 = vunpack.c.l.b16 %v2025
        %v2065 = vunpack.c.l.b16 %v2026
        %v2066 = vunpack.c.l.b16 %v2027
        %v2067 = vunpack.c.l.b16 %v2028
        %v2068 = vpack.c.b16 %v2053, %v2052
        %v2069 = vpack.c.b16 %v2055, %v2054
        %v2070 = vpack.c.b16 %v2057, %v2056
        %v2071 = vpack.c.b16 %v2059, %v2058
        %v2072 = vpack.c.b16 %v2061, %v2060
        %v2073 = vpack.c.b16 %v2063, %v2062
        %v2074 = vpack.c.b16 %v2065, %v2064
        %v2075 = vpack.c.b16 %v2067, %v2066
        %2084 = vmatprep.subr.bf16.mxu0 0
        %2085 = vmatpush1.bf16.msra.mxu0 %v2075
        %2086 = vmatprep.subr.bf16.mxu0 0
        %2087 = vmatpush1.bf16.msra.mxu0 %v2074
        %2088 = vmatprep.subr.bf16.mxu0 0
        %2089 = vmatpush1.bf16.msra.mxu0 %v2073
        %2090 = vmatprep.subr.bf16.mxu0 0
        %2091 = vmatpush1.bf16.msra.mxu0 %v2072
        %2092 = vmatprep.subr.bf16.mxu0 0
        %2093 = vmatpush1.bf16.msra.mxu0 %v2071
        %2094 = vmatprep.subr.bf16.mxu0 0
        %2095 = vmatpush1.bf16.msra.mxu0 %v2070
        %2096 = vmatprep.subr.bf16.mxu0 0
        %2097 = vmatpush1.bf16.msra.mxu0 %v2069
        %2098 = vmatprep.subr.bf16.mxu0 0
        %2099 = vmatpush1.bf16.msra.mxu0 %v2068
        %2100 = vmatprep.subr.bf16.mxu0 0
        %2101 = vmatpush2.bf16.msra.mxu0 0
        %2102 = vmatprep.subr.bf16.mxu0 0
        %2103 = vmatpush2.bf16.msra.mxu0 0
        %2104 = vmatprep.subr.bf16.mxu0 0
        %2105 = vmatpush2.bf16.msra.mxu0 0
        %2106 = vmatprep.subr.bf16.mxu0 0
        %2107 = vmatpush2.bf16.msra.mxu0 0
        %2108 = vmatprep.subr.bf16.mxu0 0
        %2109 = vmatpush2.bf16.msra.mxu0 0
        %2110 = vmatprep.subr.bf16.mxu0 0
        %2111 = vmatpush2.bf16.msra.mxu0 0
        %2112 = vmatprep.subr.bf16.mxu0 0
        %2113 = vmatpush2.bf16.msra.mxu0 0
        %2114 = vmatprep.subr.bf16.mxu0 0
        %2115 = vmatpush2.bf16.msra.mxu0 0
        %2116 = vmatprep.mubr.bf16.mxu0 0
        %2117 = vmatmul.mubr.bf16.gmra.mxu0 %v2009
        %v2118 = vpop.f32.mrf.mxu0
        %v2119 = vadd.f32 %v2034, %v2118
        %v2120 = vpop.f32.mrf.mxu0
        %v2121 = vpop.f32.mrf.mxu0
        %v2122 = vadd.f32 %v2034, %v2121
        %v2123 = vpop.f32.mrf.mxu0
        %2124 = vmatprep.mubr.bf16.mxu0 0
        %2125 = vmatmul.mubr.bf16.gmra.mxu0 %v2010
        %v2126 = vpop.f32.mrf.mxu0
        %v2127 = vadd.f32 %v2034, %v2126
        %v2128 = vpop.f32.mrf.mxu0
        %v2129 = vpop.f32.mrf.mxu0
        %v2130 = vadd.f32 %v2034, %v2129
        %v2131 = vpop.f32.mrf.mxu0
        %2132 = vmatprep.mubr.bf16.mxu0 0
        %2133 = vmatmul.mubr.bf16.gmra.mxu0 %v2011
        %v2134 = vpop.f32.mrf.mxu0
        %v2135 = vadd.f32 %v2034, %v2134
        %v2136 = vpop.f32.mrf.mxu0
        %v2137 = vpop.f32.mrf.mxu0
        %v2138 = vadd.f32 %v2034, %v2137
        %v2139 = vpop.f32.mrf.mxu0
        %2140 = vmatprep.mubr.bf16.mxu0 0
        %2141 = vmatmul.mubr.bf16.gmra.mxu0 %v2012
        %v2142 = vpop.f32.mrf.mxu0
        %v2143 = vadd.f32 %v2034, %v2142
        %v2144 = vpop.f32.mrf.mxu0
        %v2145 = vpop.f32.mrf.mxu0
        %v2146 = vadd.f32 %v2034, %v2145
        %v2147 = vpop.f32.mrf.mxu0
        %2148 = vdwg.mxu0
        %v2149 = vmax.f32 %v2119, 0.0
        %v2150 = vmax.f32 %v2122, 0.0
        %v2151 = vmax.f32 %v2127, 0.0
        %v2152 = vmax.f32 %v2130, 0.0
        %v2153 = vmax.f32 %v2135, 0.0
        %v2154 = vmax.f32 %v2138, 0.0
        %v2155 = vmax.f32 %v2143, 0.0
        %v2156 = vmax.f32 %v2146, 0.0
        %v2157 = vpack.c.bf16 %v2150, %v2149
        %v2158 = vpack.c.bf16 %v2152, %v2151
        %v2159 = vpack.c.bf16 %v2154, %v2153
        %v2160 = vpack.c.bf16 %v2156, %v2155
        %v2161 = vld [vmem:[%s19] sm:$0xf]
        %v2162 = vld [vmem:[%s19 + $0x4] sm:$0xf]
        %v2163 = vld [vmem:[%s19 + $0x8] sm:$0xf]
        %v2164 = vld [vmem:[%s19 + $0xc] sm:$0xf]
        %v2165 = vld [vmem:[%s19 + $0x10] sm:$0xf]
        %v2166 = vld [vmem:[%s19 + $0x14] sm:$0xf]
        %v2167 = vld [vmem:[%s19 + $0x18] sm:$0xf]
        %v2168 = vld [vmem:[%s19 + $0x1c] sm:$0xf]
        %v2169 = vld [vmem:[%s19 + $0x20] sm:$0xf]
        %v2170 = vld [vmem:[%s19 + $0x24] sm:$0xf]
        %v2171 = vld [vmem:[%s19 + $0x28] sm:$0xf]
        %v2172 = vld [vmem:[%s19 + $0x2c] sm:$0xf]
        %v2173 = vld [vmem:[%s19 + $0x30] sm:$0xf]
        %v2174 = vld [vmem:[%s19 + $0x34] sm:$0xf]
        %v2175 = vld [vmem:[%s19 + $0x38] sm:$0xf]
        %v2176 = vld [vmem:[%s19 + $0x3c] sm:$0xf]
        %v2177 = vld [vmem:[%s20] sm:$0x1]
        %v2179 = vlaneseq
        %v2180 = vshrl.u32 %v2179, 7
        %v2181 = vsub.s32 0, %v2180
        %v2182 = vrot.slane %v2177, %v2181
        %v2200 = vunpack.c.l.b16 %v2161
        %v2201 = vunpack.c.l.b16 %v2162
        %v2202 = vunpack.c.l.b16 %v2163
        %v2203 = vunpack.c.l.b16 %v2164
        %v2204 = vunpack.c.l.b16 %v2165
        %v2205 = vunpack.c.l.b16 %v2166
        %v2206 = vunpack.c.l.b16 %v2167
        %v2207 = vunpack.c.l.b16 %v2168
        %v2208 = vunpack.c.l.b16 %v2169
        %v2209 = vunpack.c.l.b16 %v2170
        %v2210 = vunpack.c.l.b16 %v2171
        %v2211 = vunpack.c.l.b16 %v2172
        %v2212 = vunpack.c.l.b16 %v2173
        %v2213 = vunpack.c.l.b16 %v2174
        %v2214 = vunpack.c.l.b16 %v2175
        %v2215 = vunpack.c.l.b16 %v2176
        %v2216 = vpack.c.b16 %v2201, %v2200
        %v2217 = vpack.c.b16 %v2203, %v2202
        %v2218 = vpack.c.b16 %v2205, %v2204
        %v2219 = vpack.c.b16 %v2207, %v2206
        %v2220 = vpack.c.b16 %v2209, %v2208
        %v2221 = vpack.c.b16 %v2211, %v2210
        %v2222 = vpack.c.b16 %v2213, %v2212
        %v2223 = vpack.c.b16 %v2215, %v2214
        %2232 = vmatprep.subr.bf16.mxu0 0
        %2233 = vmatpush1.bf16.msra.mxu0 %v2223
        %2234 = vmatprep.subr.bf16.mxu0 0
        %2235 = vmatpush1.bf16.msra.mxu0 %v2222
        %2236 = vmatprep.subr.bf16.mxu0 0
        %2237 = vmatpush1.bf16.msra.mxu0 %v2221
        %2238 = vmatprep.subr.bf16.mxu0 0
        %2239 = vmatpush1.bf16.msra.mxu0 %v2220
        %2240 = vmatprep.subr.bf16.mxu0 0
        %2241 = vmatpush1.bf16.msra.mxu0 %v2219
        %2242 = vmatprep.subr.bf16.mxu0 0
        %2243 = vmatpush1.bf16.msra.mxu0 %v2218
        %2244 = vmatprep.subr.bf16.mxu0 0
        %2245 = vmatpush1.bf16.msra.mxu0 %v2217
        %2246 = vmatprep.subr.bf16.mxu0 0
        %2247 = vmatpush1.bf16.msra.mxu0 %v2216
        %2248 = vmatprep.subr.bf16.mxu0 0
        %2249 = vmatpush2.bf16.msra.mxu0 0
        %2250 = vmatprep.subr.bf16.mxu0 0
        %2251 = vmatpush2.bf16.msra.mxu0 0
        %2252 = vmatprep.subr.bf16.mxu0 0
        %2253 = vmatpush2.bf16.msra.mxu0 0
        %2254 = vmatprep.subr.bf16.mxu0 0
        %2255 = vmatpush2.bf16.msra.mxu0 0
        %2256 = vmatprep.subr.bf16.mxu0 0
        %2257 = vmatpush2.bf16.msra.mxu0 0
        %2258 = vmatprep.subr.bf16.mxu0 0
        %2259 = vmatpush2.bf16.msra.mxu0 0
        %2260 = vmatprep.subr.bf16.mxu0 0
        %2261 = vmatpush2.bf16.msra.mxu0 0
        %2262 = vmatprep.subr.bf16.mxu0 0
        %2263 = vmatpush2.bf16.msra.mxu0 0
        %2264 = vmatprep.mubr.bf16.mxu0 0
        %2265 = vmatmul.mubr.bf16.gmra.mxu0 %v2157
        %v2266 = vpop.f32.mrf.mxu0
        %v2267 = vadd.f32 %v2182, %v2266
        %v2268 = vpop.f32.mrf.mxu0
        %v2269 = vpop.f32.mrf.mxu0
        %v2270 = vadd.f32 %v2182, %v2269
        %v2271 = vpop.f32.mrf.mxu0
        %2272 = vmatprep.mubr.bf16.mxu0 0
        %2273 = vmatmul.mubr.bf16.gmra.mxu0 %v2158
        %v2274 = vpop.f32.mrf.mxu0
        %v2275 = vadd.f32 %v2182, %v2274
        %v2276 = vpop.f32.mrf.mxu0
        %v2277 = vpop.f32.mrf.mxu0
        %v2278 = vadd.f32 %v2182, %v2277
        %v2279 = vpop.f32.mrf.mxu0
        %2280 = vmatprep.mubr.bf16.mxu0 0
        %2281 = vmatmul.mubr.bf16.gmra.mxu0 %v2159
        %v2282 = vpop.f32.mrf.mxu0
        %v2283 = vadd.f32 %v2182, %v2282
        %v2284 = vpop.f32.mrf.mxu0
        %v2285 = vpop.f32.mrf.mxu0
        %v2286 = vadd.f32 %v2182, %v2285
        %v2287 = vpop.f32.mrf.mxu0
        %2288 = vmatprep.mubr.bf16.mxu0 0
        %2289 = vmatmul.mubr.bf16.gmra.mxu0 %v2160
        %v2290 = vpop.f32.mrf.mxu0
        %v2291 = vadd.f32 %v2182, %v2290
        %v2292 = vpop.f32.mrf.mxu0
        %v2293 = vpop.f32.mrf.mxu0
        %v2294 = vadd.f32 %v2182, %v2293
        %v2295 = vpop.f32.mrf.mxu0
        %2296 = vdwg.mxu0
        %v2297 = vsub.f32 0.0, %v2267
        %v2298 = vsub.f32 0.0, %v2270
        %v2299 = vsub.f32 0.0, %v2275
        %v2300 = vsub.f32 0.0, %v2278
        %v2301 = vsub.f32 0.0, %v2283
        %v2302 = vsub.f32 0.0, %v2286
        %v2303 = vsub.f32 0.0, %v2291
        %v2304 = vsub.f32 0.0, %v2294
        %v2305 = vmul.f32 %v2297, 1.442695
        %v2306 = vpow.pop %v2305
        %v2307 = vmul.f32 %v2298, 1.442695
        %v2308 = vpow.pop %v2307
        %v2309 = vmul.f32 %v2299, 1.442695
        %v2310 = vpow.pop %v2309
        %v2311 = vmul.f32 %v2300, 1.442695
        %v2312 = vpow.pop %v2311
        %v2313 = vmul.f32 %v2301, 1.442695
        %v2314 = vpow.pop %v2313
        %v2315 = vmul.f32 %v2302, 1.442695
        %v2316 = vpow.pop %v2315
        %v2317 = vmul.f32 %v2303, 1.442695
        %v2318 = vpow.pop %v2317
        %v2319 = vmul.f32 %v2304, 1.442695
        %v2320 = vpow.pop %v2319
        %v2321 = vadd.f32 %v2306, 1.0
        %v2322 = vadd.f32 %v2308, 1.0
        %v2323 = vadd.f32 %v2310, 1.0
        %v2324 = vadd.f32 %v2312, 1.0
        %v2325 = vadd.f32 %v2314, 1.0
        %v2326 = vadd.f32 %v2316, 1.0
        %v2327 = vadd.f32 %v2318, 1.0
        %v2328 = vadd.f32 %v2320, 1.0
        %v2329 = vrcp.pop %v2321
        %v2330 = vrcp.pop %v2322
        %v2331 = vrcp.pop %v2323
        %v2332 = vrcp.pop %v2324
        %v2333 = vrcp.pop %v2325
        %v2334 = vrcp.pop %v2326
        %v2335 = vrcp.pop %v2327
        %v2336 = vrcp.pop %v2328
        %2337 = vst [vmem:[%s779] sm:$0xff] %v2329
        %2338 = vst [vmem:[%s779 + $0x8] sm:$0xff] %v2330
        %2339 = vst [vmem:[%s779 + $0x10] sm:$0xff] %v2331
        %2340 = vst [vmem:[%s779 + $0x18] sm:$0xff] %v2332
        %2341 = vst [vmem:[%s779 + $0x20] sm:$0xff] %v2333
        %2342 = vst [vmem:[%s779 + $0x28] sm:$0xff] %v2334
        %2343 = vst [vmem:[%s779 + $0x30] sm:$0xff] %v2335
        %2344 = vst [vmem:[%s779 + $0x38] sm:$0xff] %v2336
        %s2345 = sand.u32 %s504, 1
        %s2346 = scalar_lea.sflag [#allocation4], %s2345
        %s2347 = sand.u32 %s504, 1
        %s2348 = smul.addr %s2347, 64
        %s2349 = scalar_lea.vmem [#allocation11], %s2348
        %s2350 = smul.u32 8, %s40
        %p2351 = scmp.lt.s32.totalorder %s2350, 31
        %s2352 = scalar_select %p2351, %s2350, 31
        %s2353 = smul.addr %s2352, 8
        %s2354 = scalar_lea.vmem %s22, %s2353
        // Predicated region
        $region125: #{tpu_custom_call.1} parent=103 // pred_check
          %p2355 = pneg %p514
        $region126: #{tpu_custom_call.1} parent=103 // pred_check_branch
          %2357 = sbr.rel (%p2355) target = $region128
        $region127: #{tpu_custom_call.1} parent=103 // pred_region
          %s2358 = smul.u32 8, %s40
          %s2360 = ssub.s32 1024, 1024
          %2361 = vsyncadd %s2346, %s2360
          %s2362 = smul.addr %s2358, 128
          %s2363 = scalar_lea.hbm %s21, %s2362
          %s2364 = sshll.u32 %s2349, 4
          %s2365 = int_to_ptr.vmem [resolvable:$true] %s2364
          %2370 = dma.vmem_to_hbm [thread:$0]  %s2365, 1024, %s2363, %s2346, 128, 128, 8
        $region128: #{tpu_custom_call.1} parent=103 // pred_fallthru
          _
        // Predicated region
        $region129: #{tpu_custom_call.1} parent=103 // pred_check
          %p2371 = pneg %p540
        $region130: #{tpu_custom_call.1} parent=103 // pred_check_branch
          %2373 = sbr.rel (%p2371) target = $region132
        $region131: #{tpu_custom_call.1} parent=103 // pred_region
          %s2374 = smul.u32 8, %s40
        $region132: #{tpu_custom_call.1} parent=103 // pred_fallthru
          _
      $region104: #{tpu_custom_call.1} parent=5 // pred_fallthru
        _
      %p2375 = scmp.le.s32.totalorder 2, %s35
      // Predicated region
      $region133: #{tpu_custom_call.1} parent=5 // pred_check
        %p2376 = pneg %p2375
      $region134: #{tpu_custom_call.1} parent=5 // pred_check_branch
        %2378 = sbr.rel (%p2376) target = $region136
      $region135: #{tpu_custom_call.1} parent=5 // pred_region
        %s2379 = ssub.s32 %s35, 2
        // Predicated region
        $region137: #{tpu_custom_call.1} parent=135 // pred_check
          %p2380 = pneg %p520
        $region138: #{tpu_custom_call.1} parent=135 // pred_check_branch
          %2382 = sbr.rel (%p2380) target = $region140
        $region139: #{tpu_custom_call.1} parent=135 // pred_region
          %s2383 = sand.u32 %s505, 1
          %s2384 = scalar_lea.sflag [#allocation4], %s2383
          %s2385 = sand.u32 %s505, 1
          %s2386 = smul.addr %s2385, 64
          %s2387 = scalar_lea.vmem [#allocation11], %s2386
          %2388 = dma.done %s2384, 1024
        $region140: #{tpu_custom_call.1} parent=135 // pred_fallthru
          _
        // Predicated region
        $region141: #{tpu_custom_call.1} parent=135 // pred_check
          %p2389 = pneg %p546
        $region142: #{tpu_custom_call.1} parent=135 // pred_check_branch
          %2391 = sbr.rel (%p2389) target = $region144
        $region143: #{tpu_custom_call.1} parent=135 // pred_region
          %s2392 = smul.u32 8, %s41
          %p2393 = scmp.lt.s32.totalorder %s2392, 31
          %s2394 = scalar_select %p2393, %s2392, 31
          %s2395 = smul.addr %s2394, 8
          %s2396 = scalar_lea.vmem %s22, %s2395
        $region144: #{tpu_custom_call.1} parent=135 // pred_fallthru
          _
      $region136: #{tpu_custom_call.1} parent=5 // pred_fallthru
        _
    $region6: #{tpu_custom_call.1} parent=1 // loop_footer
      %s39 = sadd.s32 1, %s35
    $region7: #{tpu_custom_call.1} parent=1 // loop_footer_branch
      %34 = sbr.rel target = $region3
    $region8: #{tpu_custom_call.1} parent=1 // loop_exit
      _
    %2397 = vsyncpa [#allocation3], 1
    %s2398 = scalar_lea.sflag [#allocation3], 1
    %2399 = vsyncpa %s2398, 1
    %2400 = vsyncpa [#allocation6], 1
    %2401 = vsyncpa [#allocation9], 1
    %2402 = vsyncpa [#allocation4], 1
    %s2403 = scalar_lea.sflag [#allocation4], 1
    %2404 = vsyncpa %s2403, 1

</llo_original>
